<compile_context>
chip_gen: v5e
topology: v5e:2x2
jax: 0.10.0
libtpu: 0.0.40
codegen_flags: <defaults>
</compile_context>

<pallas_src>
import jax
import jax.numpy as jnp
from jax import lax
from jax.experimental import pallas as pl
from jax.experimental.pallas import tpu as pltpu


def _round_up(x, m):
    return ((x + m - 1) // m) * m


def _make_kernel(TB, Lp, L, Vp, Cp, O):
    """Kernel factory closing over static tile sizes."""
    M = TB * Lp  # rows of the flattened conv-input matmul

    def kernel(ids_ref, emb_ref, cw_ref, cb_ref, fw_ref, fb_ref, out_ref):
        # ids_ref : VMEM (TB, Lp)    int32  token ids, -1 marks zero/pad rows
        # emb_ref : VMEM (Vp, Dp)    bf16   embedding table (zero padded)
        # cw_ref  : VMEM (Dp, 3*Cp)  bf16   conv weight, taps stacked on N
        # cb_ref  : VMEM (1, Cp)     f32    conv bias   (padded channels = 0)
        # fw_ref  : VMEM (Cp, Op)    f32    fc weight   (padded rows/cols = 0)
        # fb_ref  : VMEM (1, Op)     f32    fc bias
        # out_ref : VMEM (TB, Op)    f32    softmax probabilities (lane dense)
        ids = ids_ref[...]                                      # (TB, Lp) int32

        # --- nn.Embedding as a one-hot MXU gather (exact bf16 row selection) ---
        vocab_iota = lax.broadcasted_iota(jnp.int32, (TB, Lp, Vp), 2)
        onehot = jnp.where(vocab_iota == ids[:, :, None], 1.0, 0.0)
        onehot = onehot.astype(jnp.bfloat16).reshape(M, Vp)     # tile-aligned reshape
        g = jnp.dot(onehot, emb_ref[...],
                    preferred_element_type=jnp.float32).astype(jnp.bfloat16)

        # --- Conv2d(1, C, (3, 300), padding=(1, 0)) as one flat MXU matmul ---
        # (M, Dp) @ (Dp, 3*Cp), bf16 inputs, f32 accumulation.
        y = jnp.dot(g, cw_ref[...], preferred_element_type=jnp.float32)
        y0 = y[:, 0 * Cp:1 * Cp]
        y1 = y[:, 1 * Cp:2 * Cp]
        y2 = y[:, 2 * Cp:3 * Cp]
        # conv[r] = y0[r] + y1[r+1] + y2[r+2].  Shift the small (M, Cp) outputs
        # with XLU rolls (shift M-1 == -1, M-2 == -2); wrapped rows only land in
        # per-sequence pad rows (t >= L), which the pooling mask excludes.
        conv = (y0
                + pltpu.roll(y1, shift=M - 1, axis=0)
                + pltpu.roll(y2, shift=M - 2, axis=0)
                + cb_ref[...])
        act = jnp.maximum(conv, 0.0)                            # F.relu

        # --- F.max_pool1d over the whole sequence: aligned reshape + masked max
        act = act.reshape(TB, Lp, Cp)                           # pure-layout reshape
        t_iota = lax.broadcasted_iota(jnp.int32, (TB, Lp, Cp), 1)
        act = jnp.where(t_iota < L, act, 0.0)                   # relu >= 0 -> 0 is neutral
        pooled = jnp.max(act, axis=1)                           # (TB, Cp)

        # --- Dropout(0.3) = identity (eval); Linear(C -> O) + Softmax(dim=1) ---
        logits = jnp.dot(pooled, fw_ref[...],
                         preferred_element_type=jnp.float32) + fb_ref[...]
        lane = lax.broadcasted_iota(jnp.int32, logits.shape, 1)
        logits = jnp.where(lane < O, logits, -jnp.inf)          # mask padded lanes
        m = jnp.max(logits, axis=1, keepdims=True)
        e = jnp.exp(logits - m)
        s = jnp.sum(e, axis=1, keepdims=True)
        out_ref[...] = e * pl.reciprocal(s, approx=True)

    return kernel


def my_cnn_forward(x, params):
    """Forward pass of my_CNN.  x: (B, L) int32 token ids."""
    emb_table, conv_w, conv_b, fc_w, fc_b = params
    B, L = x.shape
    V, D = emb_table.shape                  # D = 300
    C = conv_w.shape[0]                     # 100 conv channels
    O = fc_w.shape[0]                       # output_size

    Dp = _round_up(D, 128)                  # 300 -> 384 (lane-dense K)
    Cp = _round_up(C, 128)                  # 100 -> 128 (lane-dense channels)
    Op = _round_up(O, 128)                  # lane-dense output store
    Vp = _round_up(V, 128)                  # lane-dense one-hot / table rows
    Lp = _round_up(L + 2, 8)                # 8-aligned per-sequence row stride

    # Batch tile: target ~2048 matmul rows (amortizes per-step overhead and
    # fills even the v6e/v7x 256x256 MXU), always a multiple of 8 so every
    # block stays (8,128)-aligned.  Per-tile intermediates are a few MiB.
    target_rows = 2048
    tb_cap = max(8, (target_rows // Lp) // 8 * 8)
    TB = min(tb_cap, _round_up(B, 8))
    nsteps = (B + TB - 1) // TB
    B_pad = nsteps * TB

    # ---- one-time layout / weight prep (tiny XLA glue) ----
    # ids laid out with the kernel's padded row stride: row 0 = conv top pad,
    # rows 1..L = tokens, rows >= L+1 = bottom/alignment pads.  Pad rows use
    # id -1 -> all-zero one-hot -> exact zero embedding row (Conv2d padding).
    ids = jnp.full((B_pad, Lp), -1, jnp.int32)
    ids = ids.at[:B, 1:1 + L].set(x.astype(jnp.int32))

    # Embedding table: zero padded to (Vp, Dp), bf16, VMEM resident.
    # TODO(synk): for large vocabularies stream HBM row gathers per tile
    # instead of keeping the whole table in VMEM.
    emb_t = jnp.zeros((Vp, Dp), jnp.float32).at[:V, :D].set(emb_table)
    emb_t = emb_t.astype(jnp.bfloat16)

    # Conv weight (C, 1, 3, D) -> (Dp, 3*Cp): tap k lives in cols [k*Cp, k*Cp+C).
    w_taps = jnp.transpose(conv_w[:, 0, :, :], (1, 2, 0))        # (3, D, C)
    wstack = jnp.zeros((3, Dp, Cp), jnp.float32).at[:, :D, :C].set(w_taps)
    wstack = jnp.transpose(wstack, (1, 0, 2)).reshape(Dp, 3 * Cp)
    wstack = wstack.astype(jnp.bfloat16)

    cb = jnp.zeros((1, Cp), jnp.float32).at[0, :C].set(conv_b)
    fw = jnp.zeros((Cp, Op), jnp.float32).at[:C, :O].set(fc_w.T)
    fb = jnp.zeros((1, Op), jnp.float32).at[0, :O].set(fc_b)

    kernel = _make_kernel(TB, Lp, L, Vp, Cp, O)

    out_padded = pl.pallas_call(
        kernel,
        out_shape=jax.ShapeDtypeStruct((B_pad, Op), jnp.float32),
        grid_spec=pltpu.PrefetchScalarGridSpec(
            num_scalar_prefetch=0,
            grid=(nsteps,),
            in_specs=[
                pl.BlockSpec((TB, Lp), lambda i: (i, 0)),        # token ids
                pl.BlockSpec((Vp, Dp), lambda i: (0, 0)),        # embedding table
                pl.BlockSpec((Dp, 3 * Cp), lambda i: (0, 0)),    # conv weights
                pl.BlockSpec((1, Cp), lambda i: (0, 0)),         # conv bias
                pl.BlockSpec((Cp, Op), lambda i: (0, 0)),        # fc weight
                pl.BlockSpec((1, Op), lambda i: (0, 0)),         # fc bias
            ],
            out_specs=pl.BlockSpec((TB, Op), lambda i: (i, 0)),
        ),
        compiler_params=pltpu.CompilerParams(
            # No cross-step state -> batch tiles are independent; on v7x the
            # two TensorCores can split the grid between them.
            dimension_semantics=("parallel",),
            vmem_limit_bytes=48 * 1024 * 1024,                   # fits v7x 64 MiB physical
        ),
    )(ids, emb_t, wstack, cb, fw, fb)

    return out_padded[:B, :O]


def my_cnn_reference(x, params):
    """Pure-JAX reference matching the kernel's numerics (bf16 conv matmul)."""
    emb_table, conv_w, conv_b, fc_w, fc_b = params
    B, L = x.shape
    emb = jnp.take(emb_table, x, axis=0).astype(jnp.bfloat16)       # (B, L, D)
    emb_pad = jnp.pad(emb, ((0, 0), (1, 1), (0, 0)))                # (B, L+2, D)
    w = jnp.transpose(conv_w[:, 0, :, :], (1, 2, 0)).astype(jnp.bfloat16)  # (3, D, C)
    conv = sum(
        jnp.einsum("btd,dc->btc", emb_pad[:, k:k + L, :], w[k],
                   preferred_element_type=jnp.float32)
        for k in range(3)) + conv_b[None, None, :]
    act = jnp.maximum(conv, 0.0)
    pooled = jnp.max(act, axis=1)                                   # (B, C)
    logits = pooled @ fc_w.T + fc_b
    return jax.nn.softmax(logits, axis=1)


def init_params(key, output_size, vocab_size, padding_idx):
    D, C = 300, 100
    k1, k2, k3, k4, k5 = jax.random.split(key, 5)
    emb = jax.random.normal(k1, (vocab_size, D), jnp.float32) * 0.1
    emb = emb.at[padding_idx].set(0.0)          # padding_idx row is zeroed
    conv_w = jax.random.normal(k2, (C, 1, 3, D), jnp.float32) * 0.05
    conv_b = jax.random.normal(k3, (C,), jnp.float32) * 0.05
    fc_w = jax.random.normal(k4, (output_size, C), jnp.float32) * 0.1
    fc_b = jax.random.normal(k5, (output_size,), jnp.float32) * 0.1
    return emb, conv_w, conv_b, fc_w, fc_b


if __name__ == "__main__":
    output_size, vocab_size, padding_idx = 4, 100, 0
    B, L = 2, 8

    key = jax.random.PRNGKey(0)
    pkey, xkey = jax.random.split(key)
    params = init_params(pkey, output_size, vocab_size, padding_idx)

    # Token ids in [1, vocab_size); include a padding token to exercise padding_idx.
    x = jax.random.randint(xkey, (B, L), 1, vocab_size, dtype=jnp.int32)
    x = x.at[0, -1].set(padding_idx)

    out = my_cnn_forward(x, params)
    out = jax.block_until_ready(out)
    ref = my_cnn_reference(x, params)

    assert out.shape == (B, output_size)
    # approx reciprocal in the softmax denominator -> rows sum to 1 within ~1e-3.
    assert jnp.allclose(jnp.sum(out, axis=1), 1.0, atol=5e-3), jnp.sum(out, axis=1)
    assert jnp.allclose(out, ref, atol=1e-2), (out, ref)
    print("KERNEL_OK")
</pallas_src>

<mosaic_0001>
module attributes {stable_mosaic.version = 11 : i64} {
  func.func @kernel(%arg0: i32, %arg1: memref<8x16xi32, #tpu.memory_space<vmem>>, %arg2: memref<128x384xbf16, #tpu.memory_space<vmem>>, %arg3: memref<384x384xbf16, #tpu.memory_space<vmem>>, %arg4: memref<1x128xf32, #tpu.memory_space<vmem>>, %arg5: memref<128x128xf32, #tpu.memory_space<vmem>>, %arg6: memref<1x128xf32, #tpu.memory_space<vmem>>, %arg7: memref<8x128xf32, #tpu.memory_space<vmem>>) attributes {dimension_semantics = [#tpu.dimension_semantics<parallel>], iteration_bounds = array<i64: 1>, scalar_prefetch = 0 : i64, scratch_operands = 0 : i64, tpu.core_type = #tpu.core_type<tc>, window_params = [{transform_indices = @transform_0, window_bounds = array<i64: 8, 16>}, {pipeline_mode = #tpu.pipeline_mode<synchronous>, transform_indices = @transform_1, window_bounds = array<i64: 128, 384>}, {pipeline_mode = #tpu.pipeline_mode<synchronous>, transform_indices = @transform_2, window_bounds = array<i64: 384, 384>}, {pipeline_mode = #tpu.pipeline_mode<synchronous>, transform_indices = @transform_3, window_bounds = array<i64: 1, 128>}, {pipeline_mode = #tpu.pipeline_mode<synchronous>, transform_indices = @transform_4, window_bounds = array<i64: 128, 128>}, {pipeline_mode = #tpu.pipeline_mode<synchronous>, transform_indices = @transform_5, window_bounds = array<i64: 1, 128>}, {transform_indices = @transform_6, window_bounds = array<i64: 8, 128>}]} {
    %c0 = arith.constant 0 : index
    %c0_0 = arith.constant 0 : index
    %0 = vector.load %arg1[%c0, %c0_0] : memref<8x16xi32, #tpu.memory_space<vmem>>, vector<8x16xi32>
    %1 = tpu.iota {dimensions = array<i32: 2>} : vector<8x16x128xi32>
    %2 = vector.shape_cast %0 : vector<8x16xi32> to vector<8x16x1xi32>
    %3 = vector.broadcast %2 : vector<8x16x1xi32> to vector<8x16x128xi32>
    %4 = arith.cmpi eq, %1, %3 : vector<8x16x128xi32>
    %cst = arith.constant 1.000000e+00 : f32
    %cst_1 = arith.constant 0.000000e+00 : f32
    %5 = vector.broadcast %cst : f32 to vector<8x16x128xf32>
    %6 = vector.broadcast %cst_1 : f32 to vector<8x16x128xf32>
    %7 = arith.select %4, %5, %6 : vector<8x16x128xi1>, vector<8x16x128xf32>
    %8 = arith.truncf %7 : vector<8x16x128xf32> to vector<8x16x128xbf16>
    %9 = vector.shape_cast %8 : vector<8x16x128xbf16> to vector<128x128xbf16>
    %c0_2 = arith.constant 0 : index
    %c0_3 = arith.constant 0 : index
    %10 = vector.load %arg2[%c0_2, %c0_3] : memref<128x384xbf16, #tpu.memory_space<vmem>>, vector<128x384xbf16>
    %cst_4 = arith.constant dense<0.000000e+00> : vector<128x384xf32>
    %11 = tpu.matmul %9, %10, %cst_4 {dimension_numbers = #tpu.dot_dimension_numbers<[1], [0], [0], [1], [0, 0, 1, 1], [], []>} : vector<128x128xbf16>, vector<128x384xbf16>, vector<128x384xf32> -> vector<128x384xf32>
    %12 = arith.truncf %11 : vector<128x384xf32> to vector<128x384xbf16>
    %c0_5 = arith.constant 0 : index
    %c0_6 = arith.constant 0 : index
    %13 = vector.load %arg3[%c0_5, %c0_6] : memref<384x384xbf16, #tpu.memory_space<vmem>>, vector<384x384xbf16>
    %cst_7 = arith.constant dense<0.000000e+00> : vector<128x384xf32>
    %14 = tpu.matmul %12, %13, %cst_7 {dimension_numbers = #tpu.dot_dimension_numbers<[1], [0], [0], [1], [0, 0, 1, 1], [], []>} : vector<128x384xbf16>, vector<384x384xbf16>, vector<128x384xf32> -> vector<128x384xf32>
    %15 = vector.extract_strided_slice %14 {offsets = [0, 0], sizes = [128, 128], strides = [1, 1]} : vector<128x384xf32> to vector<128x128xf32>
    %16 = vector.extract_strided_slice %14 {offsets = [0, 128], sizes = [128, 128], strides = [1, 1]} : vector<128x384xf32> to vector<128x128xf32>
    %17 = vector.extract_strided_slice %14 {offsets = [0, 256], sizes = [128, 128], strides = [1, 1]} : vector<128x384xf32> to vector<128x128xf32>
    %c127_i32 = arith.constant 127 : i32
    %18 = tpu.dynamic_rotate %16 by %c127_i32 dim 0 : vector<128x128xf32>, i32 -> vector<128x128xf32>
    %19 = arith.addf %15, %18 : vector<128x128xf32>
    %c126_i32 = arith.constant 126 : i32
    %20 = tpu.dynamic_rotate %17 by %c126_i32 dim 0 : vector<128x128xf32>, i32 -> vector<128x128xf32>
    %21 = arith.addf %19, %20 : vector<128x128xf32>
    %c0_8 = arith.constant 0 : index
    %c0_9 = arith.constant 0 : index
    %22 = vector.load %arg4[%c0_8, %c0_9] : memref<1x128xf32, #tpu.memory_space<vmem>>, vector<1x128xf32>
    %23 = vector.broadcast %22 : vector<1x128xf32> to vector<128x128xf32>
    %24 = arith.addf %21, %23 : vector<128x128xf32>
    %cst_10 = arith.constant 0.000000e+00 : f32
    %25 = vector.broadcast %cst_10 : f32 to vector<128x128xf32>
    %26 = arith.maximumf %24, %25 : vector<128x128xf32>
    %27 = vector.shape_cast %26 : vector<128x128xf32> to vector<8x16x128xf32>
    %28 = tpu.iota {dimensions = array<i32: 1>} : vector<8x16x128xi32>
    %c8_i32 = arith.constant 8 : i32
    %29 = vector.broadcast %c8_i32 : i32 to vector<8x16x128xi32>
    %30 = arith.cmpi slt, %28, %29 : vector<8x16x128xi32>
    %cst_11 = arith.constant 0.000000e+00 : f32
    %31 = vector.broadcast %cst_11 : f32 to vector<8x16x128xf32>
    %32 = arith.select %30, %27, %31 : vector<8x16x128xi1>, vector<8x16x128xf32>
    %cst_12 = arith.constant dense<0xFF800000> : vector<8x128xf32>
    %33 = vector.multi_reduction <maximumf>, %32, %cst_12 [1] : vector<8x16x128xf32> to vector<8x128xf32>
    %c0_13 = arith.constant 0 : index
    %c0_14 = arith.constant 0 : index
    %34 = vector.load %arg5[%c0_13, %c0_14] : memref<128x128xf32, #tpu.memory_space<vmem>>, vector<128x128xf32>
    %cst_15 = arith.constant dense<0.000000e+00> : vector<8x128xf32>
    %35 = tpu.matmul %33, %34, %cst_15 {dimension_numbers = #tpu.dot_dimension_numbers<[1], [0], [0], [1], [0, 0, 1, 1], [], []>} : vector<8x128xf32>, vector<128x128xf32>, vector<8x128xf32> -> vector<8x128xf32>
    %c0_16 = arith.constant 0 : index
    %c0_17 = arith.constant 0 : index
    %36 = vector.load %arg6[%c0_16, %c0_17] : memref<1x128xf32, #tpu.memory_space<vmem>>, vector<1x128xf32>
    %37 = vector.broadcast %36 : vector<1x128xf32> to vector<8x128xf32>
    %38 = arith.addf %35, %37 : vector<8x128xf32>
    %39 = tpu.iota {dimensions = array<i32: 1>} : vector<8x128xi32>
    %c4_i32 = arith.constant 4 : i32
    %40 = vector.broadcast %c4_i32 : i32 to vector<8x128xi32>
    %41 = arith.cmpi slt, %39, %40 : vector<8x128xi32>
    %cst_18 = arith.constant 0xFF800000 : f32
    %42 = vector.broadcast %cst_18 : f32 to vector<8x128xf32>
    %43 = arith.select %41, %38, %42 : vector<8x128xi1>, vector<8x128xf32>
    %cst_19 = arith.constant dense<0xFF800000> : vector<8xf32>
    %44 = vector.multi_reduction <maximumf>, %43, %cst_19 [1] : vector<8x128xf32> to vector<8xf32>
    %45 = vector.shape_cast %44 : vector<8xf32> to vector<8x1xf32>
    %46 = vector.broadcast %45 : vector<8x1xf32> to vector<8x128xf32>
    %47 = arith.subf %43, %46 : vector<8x128xf32>
    %48 = math.exp %47 : vector<8x128xf32>
    %cst_20 = arith.constant dense<0.000000e+00> : vector<8xf32>
    %49 = vector.multi_reduction <add>, %48, %cst_20 [1] : vector<8x128xf32> to vector<8xf32>
    %50 = vector.shape_cast %49 : vector<8xf32> to vector<8x1xf32>
    %51 = tpu.reciprocal %50 {approx = true} : vector<8x1xf32> -> vector<8x1xf32>
    %52 = vector.broadcast %51 : vector<8x1xf32> to vector<8x128xf32>
    %53 = arith.mulf %48, %52 : vector<8x128xf32>
    %c0_21 = arith.constant 0 : index
    %c0_22 = arith.constant 0 : index
    %54 = vector.load %arg7[%c0_21, %c0_22] : memref<8x128xf32, #tpu.memory_space<vmem>>, vector<8x128xf32>
    tpu.vector_store %arg7[%c0_21, %c0_22], %53 {strides = array<i32>} : memref<8x128xf32, #tpu.memory_space<vmem>>, vector<8x128xf32>,
    return
  }
  func.func @transform_0(%arg0: i32) -> (i32, i32) {
    %c0_i32 = arith.constant 0 : i32
    %c0_i32_0 = arith.constant 0 : i32
    return %arg0, %c0_i32 : i32, i32
  }
  func.func @transform_1(%arg0: i32) -> (i32, i32) {
    %c0_i32 = arith.constant 0 : i32
    %c0_i32_0 = arith.constant 0 : i32
    %c0_i32_1 = arith.constant 0 : i32
    return %c0_i32, %c0_i32_0 : i32, i32
  }
  func.func @transform_2(%arg0: i32) -> (i32, i32) {
    %c0_i32 = arith.constant 0 : i32
    %c0_i32_0 = arith.constant 0 : i32
    %c0_i32_1 = arith.constant 0 : i32
    return %c0_i32, %c0_i32_0 : i32, i32
  }
  func.func @transform_3(%arg0: i32) -> (i32, i32) {
    %c0_i32 = arith.constant 0 : i32
    %c0_i32_0 = arith.constant 0 : i32
    %c0_i32_1 = arith.constant 0 : i32
    return %c0_i32, %c0_i32_0 : i32, i32
  }
  func.func @transform_4(%arg0: i32) -> (i32, i32) {
    %c0_i32 = arith.constant 0 : i32
    %c0_i32_0 = arith.constant 0 : i32
    %c0_i32_1 = arith.constant 0 : i32
    return %c0_i32, %c0_i32_0 : i32, i32
  }
  func.func @transform_5(%arg0: i32) -> (i32, i32) {
    %c0_i32 = arith.constant 0 : i32
    %c0_i32_0 = arith.constant 0 : i32
    %c0_i32_1 = arith.constant 0 : i32
    return %c0_i32, %c0_i32_0 : i32, i32
  }
  func.func @transform_6(%arg0: i32) -> (i32, i32) {
    %c0_i32 = arith.constant 0 : i32
    %c0_i32_0 = arith.constant 0 : i32
    return %arg0, %c0_i32 : i32, i32
  }
}

</mosaic_0001>

<llo_original>
// kernel: tpu_custom_call.1
$region0: #{tpu_custom_call.1}
  #allocation0 [shape = 'u32[]', space=smem, size = 0x4, offset = 0x4, fixed_abs, tag = 'smem constant byte address 0x4 - core index']
  #allocation1 [shape = 'u32[72,128]{1,0:T(1,128)}', space=vmem, size = 0x9000, scoped, tag = 'internal scratch']
  %s0 = inlined_call_operand.hbm [shape: s32[8,16], index: 0, kind: input, shape index: {}]
  %s1 = inlined_call_operand.hbm [shape: bf16[128,384], index: 1, kind: input, shape index: {}]
  %s2 = inlined_call_operand.hbm [shape: bf16[384,384], index: 2, kind: input, shape index: {}]
  %s3 = inlined_call_operand.vmem [shape: f32[1,128], index: 3, kind: input, shape index: {}]
  %s4 = inlined_call_operand.hbm [shape: f32[128,128], index: 4, kind: input, shape index: {}]
  %s5 = inlined_call_operand.vmem [shape: f32[1,128], index: 5, kind: input, shape index: {}]
  %s6 = inlined_call_operand.hbm [shape: f32[8,128], index: 6, kind: output, shape index: {}]
  %s7 = sld [smem:[#allocation0]]
  $region50: #{tpu_custom_call.1} parent=0
    _
  %s9 = ssub.s32 1, %s7
  %s10 = scalar_select 0, %s9, %s7
  $region1: #{tpu_custom_call.1} parent=0
    #allocation2 [shape = 'u8[4096]{0}', space=vmem, size = 0x1000, scoped, tag = 'input window, operand 0, single buffered']
    #allocation3 [shape = 's32[1]{0}', space=sflag, size = 0x4, scoped, tag = 'scoped memory for tpu_custom_call.1']
    #allocation4 [shape = 's32[1]{0}', space=sflag, size = 0x4, scoped, tag = 'scoped memory for tpu_custom_call.1']
    #allocation5 [shape = 'u8[98304]{0}', space=vmem, size = 0x18000, scoped, tag = 'input window, operand 1, single buffered']
    #allocation6 [shape = 's32[1]{0}', space=sflag, size = 0x4, scoped, tag = 'scoped memory for tpu_custom_call.1']
    #allocation7 [shape = 'u8[294912]{0}', space=vmem, size = 0x48000, scoped, tag = 'input window, operand 2, single buffered']
    #allocation8 [shape = 'u8[65536]{0}', space=vmem, size = 0x10000, scoped, tag = 'input window, operand 4, single buffered']
    #allocation9 [shape = 's32[1]{0}', space=sflag, size = 0x4, scoped, tag = 'scoped memory for tpu_custom_call.1']
    #allocation10 [shape = 'u8[4096]{0}', space=vmem, size = 0x1000, scoped, tag = 'output window, operand 0, single buffered']
    %11 = vsyncpa [#allocation3], 0
    %12 = vsyncpa [#allocation6], 0
    %13 = vsyncpa [#allocation9], 0
    %14 = vsyncpa [#allocation4], 0
    // Predicated region
    $region2: #{tpu_custom_call.1} parent=1 // pred_check
      _
    $region3: #{tpu_custom_call.1} parent=1 // pred_check_branch
      %16 = sbr.rel (0) target = $region5
    $region4: #{tpu_custom_call.1} parent=1 // pred_region
      %18 = vsyncadd [#allocation3], 0
      %s20 = sshll.u32 %s0, 4
      %s21 = int_to_ptr.hbm [resolvable:$true] %s20
      %s22 = sshll.u32 [#allocation2], 4
      %s23 = int_to_ptr.vmem [resolvable:$true] %s22
      %25 = dma.hbm_to_vmem [thread:$0]  %s21, 128, %s23, [#allocation3]
    $region5: #{tpu_custom_call.1} parent=1 // pred_fallthru
      _
    // Predicated region
    $region6: #{tpu_custom_call.1} parent=1 // pred_check
      _
    $region7: #{tpu_custom_call.1} parent=1 // pred_check_branch
      %27 = sbr.rel (0) target = $region9
    $region8: #{tpu_custom_call.1} parent=1 // pred_region
      %29 = vsyncadd [#allocation6], 0
      %s30 = sshll.u32 %s1, 4
      %s31 = int_to_ptr.hbm [resolvable:$true] %s30
      %s32 = sshll.u32 [#allocation5], 4
      %s33 = int_to_ptr.vmem [resolvable:$true] %s32
      %38 = dma.hbm_to_vmem [thread:$0]  %s31, 3072, %s33, [#allocation6], 192, 192, 12
    $region9: #{tpu_custom_call.1} parent=1 // pred_fallthru
      _
    // Predicated region
    $region10: #{tpu_custom_call.1} parent=1 // pred_check
      _
    $region11: #{tpu_custom_call.1} parent=1 // pred_check_branch
      %40 = sbr.rel (0) target = $region13
    $region12: #{tpu_custom_call.1} parent=1 // pred_region
      %42 = vsyncadd [#allocation6], 0
      %s43 = sshll.u32 %s2, 4
      %s44 = int_to_ptr.hbm [resolvable:$true] %s43
      %s45 = sshll.u32 [#allocation7], 4
      %s46 = int_to_ptr.vmem [resolvable:$true] %s45
      %51 = dma.hbm_to_vmem [thread:$0]  %s44, 9216, %s46, [#allocation6], 192, 192, 12
    $region13: #{tpu_custom_call.1} parent=1 // pred_fallthru
      _
    // Predicated region
    $region14: #{tpu_custom_call.1} parent=1 // pred_check
      _
    $region15: #{tpu_custom_call.1} parent=1 // pred_check_branch
      %53 = sbr.rel (0) target = $region17
    $region16: #{tpu_custom_call.1} parent=1 // pred_region
      _
    $region17: #{tpu_custom_call.1} parent=1 // pred_fallthru
      _
    // Predicated region
    $region18: #{tpu_custom_call.1} parent=1 // pred_check
      _
    $region19: #{tpu_custom_call.1} parent=1 // pred_check_branch
      %55 = sbr.rel (0) target = $region21
    $region20: #{tpu_custom_call.1} parent=1 // pred_region
      %57 = vsyncadd [#allocation9], 0
      %s58 = sshll.u32 %s4, 4
      %s59 = int_to_ptr.hbm [resolvable:$true] %s58
      %s60 = sshll.u32 [#allocation8], 4
      %s61 = int_to_ptr.vmem [resolvable:$true] %s60
      %66 = dma.hbm_to_vmem [thread:$0]  %s59, 2048, %s61, [#allocation9], 128, 128, 8
    $region21: #{tpu_custom_call.1} parent=1 // pred_fallthru
      _
    // Predicated region
    $region22: #{tpu_custom_call.1} parent=1 // pred_check
      _
    $region23: #{tpu_custom_call.1} parent=1 // pred_check_branch
      %68 = sbr.rel (0) target = $region25
    $region24: #{tpu_custom_call.1} parent=1 // pred_region
      _
    $region25: #{tpu_custom_call.1} parent=1 // pred_fallthru
      _
    // Predicated region
    $region26: #{tpu_custom_call.1} parent=1 // pred_check
      _
    $region27: #{tpu_custom_call.1} parent=1 // pred_check_branch
      %70 = sbr.rel (0) target = $region29
    $region28: #{tpu_custom_call.1} parent=1 // pred_region
      %72 = dma.done [#allocation3], 128
    $region29: #{tpu_custom_call.1} parent=1 // pred_fallthru
      _
    // Predicated region
    $region30: #{tpu_custom_call.1} parent=1 // pred_check
      _
    $region31: #{tpu_custom_call.1} parent=1 // pred_check_branch
      %74 = sbr.rel (0) target = $region33
    $region32: #{tpu_custom_call.1} parent=1 // pred_region
      %76 = dma.done [#allocation6], 3072
    $region33: #{tpu_custom_call.1} parent=1 // pred_fallthru
      _
    // Predicated region
    $region34: #{tpu_custom_call.1} parent=1 // pred_check
      _
    $region35: #{tpu_custom_call.1} parent=1 // pred_check_branch
      %78 = sbr.rel (0) target = $region37
    $region36: #{tpu_custom_call.1} parent=1 // pred_region
      %80 = dma.done [#allocation6], 9216
    $region37: #{tpu_custom_call.1} parent=1 // pred_fallthru
      _
    // Predicated region
    $region38: #{tpu_custom_call.1} parent=1 // pred_check
      _
    $region39: #{tpu_custom_call.1} parent=1 // pred_check_branch
      %82 = sbr.rel (0) target = $region41
    $region40: #{tpu_custom_call.1} parent=1 // pred_region
      %84 = dma.done [#allocation9], 2048
    $region41: #{tpu_custom_call.1} parent=1 // pred_fallthru
      _
    %v85 = vld [vmem:[#allocation2] sm:$0xff]
    %v86 = vlaneseq
    %v87 = vand.u32 %v86, 127
    %v88 = vperm.slane %v85, 0
    %v89 = vlaneseq
    %v90 = vshrl.u32 %v89, 7
    %92 = vset.pattern.permute.xlu0 %v90
    %93 = vperm.xlu0 %92, %v88
    %v94 = vpop.permute.xlu0 %93
    %v95 = vlaneseq
    %v96 = vshrl.u32 %v95, 7
    %v97 = vadd.s32 %v96, 8
    %98 = vset.pattern.permute.xlu0 %v97
    %99 = vperm.xlu0 %98, %v88
    %v100 = vpop.permute.xlu0 %99
    %v101 = vperm.slane %v85, 1
    %v102 = vlaneseq
    %v103 = vshrl.u32 %v102, 7
    %105 = vset.pattern.permute.xlu0 %v103
    %106 = vperm.xlu0 %105, %v101
    %v107 = vpop.permute.xlu0 %106
    %v108 = vlaneseq
    %v109 = vshrl.u32 %v108, 7
    %v110 = vadd.s32 %v109, 8
    %111 = vset.pattern.permute.xlu0 %v110
    %112 = vperm.xlu0 %111, %v101
    %v113 = vpop.permute.xlu0 %112
    %v114 = vperm.slane %v85, 2
    %v115 = vlaneseq
    %v116 = vshrl.u32 %v115, 7
    %118 = vset.pattern.permute.xlu0 %v116
    %119 = vperm.xlu0 %118, %v114
    %v120 = vpop.permute.xlu0 %119
    %v121 = vlaneseq
    %v122 = vshrl.u32 %v121, 7
    %v123 = vadd.s32 %v122, 8
    %124 = vset.pattern.permute.xlu0 %v123
    %125 = vperm.xlu0 %124, %v114
    %v126 = vpop.permute.xlu0 %125
    %v127 = vperm.slane %v85, 3
    %v128 = vlaneseq
    %v129 = vshrl.u32 %v128, 7
    %131 = vset.pattern.permute.xlu0 %v129
    %132 = vperm.xlu0 %131, %v127
    %v133 = vpop.permute.xlu0 %132
    %v134 = vlaneseq
    %v135 = vshrl.u32 %v134, 7
    %v136 = vadd.s32 %v135, 8
    %137 = vset.pattern.permute.xlu0 %v136
    %138 = vperm.xlu0 %137, %v127
    %v139 = vpop.permute.xlu0 %138
    %v140 = vperm.slane %v85, 4
    %v141 = vlaneseq
    %v142 = vshrl.u32 %v141, 7
    %144 = vset.pattern.permute.xlu0 %v142
    %145 = vperm.xlu0 %144, %v140
    %v146 = vpop.permute.xlu0 %145
    %v147 = vlaneseq
    %v148 = vshrl.u32 %v147, 7
    %v149 = vadd.s32 %v148, 8
    %150 = vset.pattern.permute.xlu0 %v149
    %151 = vperm.xlu0 %150, %v140
    %v152 = vpop.permute.xlu0 %151
    %v153 = vperm.slane %v85, 5
    %v154 = vlaneseq
    %v155 = vshrl.u32 %v154, 7
    %157 = vset.pattern.permute.xlu0 %v155
    %158 = vperm.xlu0 %157, %v153
    %v159 = vpop.permute.xlu0 %158
    %v160 = vlaneseq
    %v161 = vshrl.u32 %v160, 7
    %v162 = vadd.s32 %v161, 8
    %163 = vset.pattern.permute.xlu0 %v162
    %164 = vperm.xlu0 %163, %v153
    %v165 = vpop.permute.xlu0 %164
    %v166 = vperm.slane %v85, 6
    %v167 = vlaneseq
    %v168 = vshrl.u32 %v167, 7
    %170 = vset.pattern.permute.xlu0 %v168
    %171 = vperm.xlu0 %170, %v166
    %v172 = vpop.permute.xlu0 %171
    %v173 = vlaneseq
    %v174 = vshrl.u32 %v173, 7
    %v175 = vadd.s32 %v174, 8
    %176 = vset.pattern.permute.xlu0 %v175
    %177 = vperm.xlu0 %176, %v166
    %v178 = vpop.permute.xlu0 %177
    %v179 = vperm.slane %v85, 7
    %v180 = vlaneseq
    %v181 = vshrl.u32 %v180, 7
    %183 = vset.pattern.permute.xlu0 %v181
    %184 = vperm.xlu0 %183, %v179
    %v185 = vpop.permute.xlu0 %184
    %v186 = vlaneseq
    %v187 = vshrl.u32 %v186, 7
    %v188 = vadd.s32 %v187, 8
    %189 = vset.pattern.permute.xlu0 %v188
    %190 = vperm.xlu0 %189, %v179
    %v191 = vpop.permute.xlu0 %190
    %vm192 = vcmp.eq.s32.totalorder %v87, %v94
    %vm193 = vcmp.eq.s32.totalorder %v87, %v100
    %vm194 = vcmp.eq.s32.totalorder %v87, %v107
    %vm195 = vcmp.eq.s32.totalorder %v87, %v113
    %vm196 = vcmp.eq.s32.totalorder %v87, %v120
    %vm197 = vcmp.eq.s32.totalorder %v87, %v126
    %vm198 = vcmp.eq.s32.totalorder %v87, %v133
    %vm199 = vcmp.eq.s32.totalorder %v87, %v139
    %vm200 = vcmp.eq.s32.totalorder %v87, %v146
    %vm201 = vcmp.eq.s32.totalorder %v87, %v152
    %vm202 = vcmp.eq.s32.totalorder %v87, %v159
    %vm203 = vcmp.eq.s32.totalorder %v87, %v165
    %vm204 = vcmp.eq.s32.totalorder %v87, %v172
    %vm205 = vcmp.eq.s32.totalorder %v87, %v178
    %vm206 = vcmp.eq.s32.totalorder %v87, %v185
    %vm207 = vcmp.eq.s32.totalorder %v87, %v191
    %v208 = vsel %vm192, 1.0, 0.0
    %v209 = vsel %vm193, 1.0, 0.0
    %v210 = vsel %vm194, 1.0, 0.0
    %v211 = vsel %vm195, 1.0, 0.0
    %v212 = vsel %vm196, 1.0, 0.0
    %v213 = vsel %vm197, 1.0, 0.0
    %v214 = vsel %vm198, 1.0, 0.0
    %v215 = vsel %vm199, 1.0, 0.0
    %v216 = vsel %vm200, 1.0, 0.0
    %v217 = vsel %vm201, 1.0, 0.0
    %v218 = vsel %vm202, 1.0, 0.0
    %v219 = vsel %vm203, 1.0, 0.0
    %v220 = vsel %vm204, 1.0, 0.0
    %v221 = vsel %vm205, 1.0, 0.0
    %v222 = vsel %vm206, 1.0, 0.0
    %v223 = vsel %vm207, 1.0, 0.0
    %v224 = vpack.c.bf16 %v208, %v208
    %v225 = vpack.c.bf16 %v209, %v209
    %v226 = vpack.c.bf16 %v210, %v210
    %v227 = vpack.c.bf16 %v211, %v211
    %v228 = vpack.c.bf16 %v212, %v212
    %v229 = vpack.c.bf16 %v213, %v213
    %v230 = vpack.c.bf16 %v214, %v214
    %v231 = vpack.c.bf16 %v215, %v215
    %v232 = vpack.c.bf16 %v216, %v216
    %v233 = vpack.c.bf16 %v217, %v217
    %v234 = vpack.c.bf16 %v218, %v218
    %v235 = vpack.c.bf16 %v219, %v219
    %v236 = vpack.c.bf16 %v220, %v220
    %v237 = vpack.c.bf16 %v221, %v221
    %v238 = vpack.c.bf16 %v222, %v222
    %v239 = vpack.c.bf16 %v223, %v223
    %v240 = vld [vmem:[#allocation5] sm:$0xff]
    %v241 = vld [vmem:[#allocation5 + $0x8] sm:$0xf]
    %v242 = vld [vmem:[#allocation5 + $0xc] sm:$0xff]
    %v243 = vld [vmem:[#allocation5 + $0x14] sm:$0xf]
    %v244 = vld [vmem:[#allocation5 + $0x18] sm:$0xff]
    %v245 = vld [vmem:[#allocation5 + $0x20] sm:$0xf]
    %v246 = vld [vmem:[#allocation5 + $0x24] sm:$0xff]
    %v247 = vld [vmem:[#allocation5 + $0x2c] sm:$0xf]
    %v248 = vld [vmem:[#allocation5 + $0x30] sm:$0xff]
    %v249 = vld [vmem:[#allocation5 + $0x38] sm:$0xf]
    %v250 = vld [vmem:[#allocation5 + $0x3c] sm:$0xff]
    %v251 = vld [vmem:[#allocation5 + $0x44] sm:$0xf]
    %v252 = vld [vmem:[#allocation5 + $0x48] sm:$0xff]
    %v253 = vld [vmem:[#allocation5 + $0x50] sm:$0xf]
    %v254 = vld [vmem:[#allocation5 + $0x54] sm:$0xff]
    %v255 = vld [vmem:[#allocation5 + $0x5c] sm:$0xf]
    %v256 = vld [vmem:[#allocation5 + $0x60] sm:$0xff]
    %v257 = vld [vmem:[#allocation5 + $0x68] sm:$0xf]
    %v258 = vld [vmem:[#allocation5 + $0x6c] sm:$0xff]
    %v259 = vld [vmem:[#allocation5 + $0x74] sm:$0xf]
    %v260 = vld [vmem:[#allocation5 + $0x78] sm:$0xff]
    %v261 = vld [vmem:[#allocation5 + $0x80] sm:$0xf]
    %v262 = vld [vmem:[#allocation5 + $0x84] sm:$0xff]
    %v263 = vld [vmem:[#allocation5 + $0x8c] sm:$0xf]
    %v264 = vld [vmem:[#allocation5 + $0x90] sm:$0xff]
    %v265 = vld [vmem:[#allocation5 + $0x98] sm:$0xf]
    %v266 = vld [vmem:[#allocation5 + $0x9c] sm:$0xff]
    %v267 = vld [vmem:[#allocation5 + $0xa4] sm:$0xf]
    %v268 = vld [vmem:[#allocation5 + $0xa8] sm:$0xff]
    %v269 = vld [vmem:[#allocation5 + $0xb0] sm:$0xf]
    %v270 = vld [vmem:[#allocation5 + $0xb4] sm:$0xff]
    %v271 = vld [vmem:[#allocation5 + $0xbc] sm:$0xf]
    %v288 = vunpack.c.l.b16 %v224
    %v289 = vunpack.c.l.b16 %v225
    %v290 = vunpack.c.l.b16 %v226
    %v291 = vunpack.c.l.b16 %v227
    %v292 = vunpack.c.l.b16 %v228
    %v293 = vunpack.c.l.b16 %v229
    %v294 = vunpack.c.l.b16 %v230
    %v295 = vunpack.c.l.b16 %v231
    %v296 = vunpack.c.l.b16 %v232
    %v297 = vunpack.c.l.b16 %v233
    %v298 = vunpack.c.l.b16 %v234
    %v299 = vunpack.c.l.b16 %v235
    %v300 = vunpack.c.l.b16 %v236
    %v301 = vunpack.c.l.b16 %v237
    %v302 = vunpack.c.l.b16 %v238
    %v303 = vunpack.c.l.b16 %v239
    %v304 = vpack.c.b16 %v289, %v288
    %v305 = vpack.c.b16 %v291, %v290
    %v306 = vpack.c.b16 %v293, %v292
    %v307 = vpack.c.b16 %v295, %v294
    %v308 = vpack.c.b16 %v297, %v296
    %v309 = vpack.c.b16 %v299, %v298
    %v310 = vpack.c.b16 %v301, %v300
    %v311 = vpack.c.b16 %v303, %v302
    %v352 = vunpack.c.l.b16 %v240
    %v353 = vunpack.c.h.b16 %v240
    %v354 = vunpack.c.l.b16 %v241
    %v355 = vunpack.c.l.b16 %v242
    %v356 = vunpack.c.h.b16 %v242
    %v357 = vunpack.c.l.b16 %v243
    %v358 = vunpack.c.l.b16 %v244
    %v359 = vunpack.c.h.b16 %v244
    %v360 = vunpack.c.l.b16 %v245
    %v361 = vunpack.c.l.b16 %v246
    %v362 = vunpack.c.h.b16 %v246
    %v363 = vunpack.c.l.b16 %v247
    %v364 = vunpack.c.l.b16 %v248
    %v365 = vunpack.c.h.b16 %v248
    %v366 = vunpack.c.l.b16 %v249
    %v367 = vunpack.c.l.b16 %v250
    %v368 = vunpack.c.h.b16 %v250
    %v369 = vunpack.c.l.b16 %v251
    %v370 = vunpack.c.l.b16 %v252
    %v371 = vunpack.c.h.b16 %v252
    %v372 = vunpack.c.l.b16 %v253
    %v373 = vunpack.c.l.b16 %v254
    %v374 = vunpack.c.h.b16 %v254
    %v375 = vunpack.c.l.b16 %v255
    %v376 = vunpack.c.l.b16 %v256
    %v377 = vunpack.c.h.b16 %v256
    %v378 = vunpack.c.l.b16 %v257
    %v379 = vunpack.c.l.b16 %v258
    %v380 = vunpack.c.h.b16 %v258
    %v381 = vunpack.c.l.b16 %v259
    %v382 = vunpack.c.l.b16 %v260
    %v383 = vunpack.c.h.b16 %v260
    %v384 = vunpack.c.l.b16 %v261
    %v385 = vunpack.c.l.b16 %v262
    %v386 = vunpack.c.h.b16 %v262
    %v387 = vunpack.c.l.b16 %v263
    %v388 = vunpack.c.l.b16 %v264
    %v389 = vunpack.c.h.b16 %v264
    %v390 = vunpack.c.l.b16 %v265
    %v391 = vunpack.c.l.b16 %v266
    %v392 = vunpack.c.h.b16 %v266
    %v393 = vunpack.c.l.b16 %v267
    %v394 = vunpack.c.l.b16 %v268
    %v395 = vunpack.c.h.b16 %v268
    %v396 = vunpack.c.l.b16 %v269
    %v397 = vunpack.c.l.b16 %v270
    %v398 = vunpack.c.h.b16 %v270
    %v399 = vunpack.c.l.b16 %v271
    %v400 = vpack.c.b16 %v355, %v352
    %v401 = vpack.c.b16 %v356, %v353
    %v402 = vpack.c.b16 %v357, %v354
    %v403 = vpack.c.b16 %v361, %v358
    %v404 = vpack.c.b16 %v362, %v359
    %v405 = vpack.c.b16 %v363, %v360
    %v406 = vpack.c.b16 %v367, %v364
    %v407 = vpack.c.b16 %v368, %v365
    %v408 = vpack.c.b16 %v369, %v366
    %v409 = vpack.c.b16 %v373, %v370
    %v410 = vpack.c.b16 %v374, %v371
    %v411 = vpack.c.b16 %v375, %v372
    %v412 = vpack.c.b16 %v379, %v376
    %v413 = vpack.c.b16 %v380, %v377
    %v414 = vpack.c.b16 %v381, %v378
    %v415 = vpack.c.b16 %v385, %v382
    %v416 = vpack.c.b16 %v386, %v383
    %v417 = vpack.c.b16 %v387, %v384
    %v418 = vpack.c.b16 %v391, %v388
    %v419 = vpack.c.b16 %v392, %v389
    %v420 = vpack.c.b16 %v393, %v390
    %v421 = vpack.c.b16 %v397, %v394
    %v422 = vpack.c.b16 %v398, %v395
    %v423 = vpack.c.b16 %v399, %v396
    %448 = vmatpush.bf16.msra.mxu0 %v421
    %449 = vmatpush.bf16.msra.mxu0 %v418
    %450 = vmatpush.bf16.msra.mxu0 %v415
    %451 = vmatpush.bf16.msra.mxu0 %v412
    %452 = vmatpush.bf16.msra.mxu0 %v409
    %453 = vmatpush.bf16.msra.mxu0 %v406
    %454 = vmatpush.bf16.msra.mxu0 %v403
    %455 = vmatpush.bf16.msra.mxu0 %v400
    %456 = vmatmul.bf16.gmra.mxu0 %v304
    %v457 = vpop.f32.mrf.mxu0
    %v458 = vadd.f32 0.0, %v457
    %v459 = vpop.f32.mrf.mxu0
    %v460 = vadd.f32 0.0, %v459
    %461 = vmatmul.bf16.gmra.mxu0 %v305
    %v462 = vpop.f32.mrf.mxu0
    %v463 = vadd.f32 0.0, %v462
    %v464 = vpop.f32.mrf.mxu0
    %v465 = vadd.f32 0.0, %v464
    %466 = vmatmul.bf16.gmra.mxu0 %v306
    %v467 = vpop.f32.mrf.mxu0
    %v468 = vadd.f32 0.0, %v467
    %v469 = vpop.f32.mrf.mxu0
    %v470 = vadd.f32 0.0, %v469
    %471 = vmatmul.bf16.gmra.mxu0 %v307
    %v472 = vpop.f32.mrf.mxu0
    %v473 = vadd.f32 0.0, %v472
    %v474 = vpop.f32.mrf.mxu0
    %v475 = vadd.f32 0.0, %v474
    %476 = vmatmul.bf16.gmra.mxu0 %v308
    %v477 = vpop.f32.mrf.mxu0
    %v478 = vadd.f32 0.0, %v477
    %v479 = vpop.f32.mrf.mxu0
    %v480 = vadd.f32 0.0, %v479
    %481 = vmatmul.bf16.gmra.mxu0 %v309
    %v482 = vpop.f32.mrf.mxu0
    %v483 = vadd.f32 0.0, %v482
    %v484 = vpop.f32.mrf.mxu0
    %v485 = vadd.f32 0.0, %v484
    %486 = vmatmul.bf16.gmra.mxu0 %v310
    %v487 = vpop.f32.mrf.mxu0
    %v488 = vadd.f32 0.0, %v487
    %v489 = vpop.f32.mrf.mxu0
    %v490 = vadd.f32 0.0, %v489
    %491 = vmatmul.bf16.gmra.mxu0 %v311
    %v492 = vpop.f32.mrf.mxu0
    %v493 = vadd.f32 0.0, %v492
    %v494 = vpop.f32.mrf.mxu0
    %v495 = vadd.f32 0.0, %v494
    %496 = vdwg.mxu0
    %497 = vmatpush.bf16.msra.mxu0 %v422
    %498 = vmatpush.bf16.msra.mxu0 %v419
    %499 = vmatpush.bf16.msra.mxu0 %v416
    %500 = vmatpush.bf16.msra.mxu0 %v413
    %501 = vmatpush.bf16.msra.mxu0 %v410
    %502 = vmatpush.bf16.msra.mxu0 %v407
    %503 = vmatpush.bf16.msra.mxu0 %v404
    %504 = vmatpush.bf16.msra.mxu0 %v401
    %505 = vmatmul.bf16.gmra.mxu0 %v304
    %v506 = vpop.f32.mrf.mxu0
    %v507 = vadd.f32 0.0, %v506
    %v508 = vpop.f32.mrf.mxu0
    %v509 = vadd.f32 0.0, %v508
    %510 = vmatmul.bf16.gmra.mxu0 %v305
    %v511 = vpop.f32.mrf.mxu0
    %v512 = vadd.f32 0.0, %v511
    %v513 = vpop.f32.mrf.mxu0
    %v514 = vadd.f32 0.0, %v513
    %515 = vmatmul.bf16.gmra.mxu0 %v306
    %v516 = vpop.f32.mrf.mxu0
    %v517 = vadd.f32 0.0, %v516
    %v518 = vpop.f32.mrf.mxu0
    %v519 = vadd.f32 0.0, %v518
    %520 = vmatmul.bf16.gmra.mxu0 %v307
    %v521 = vpop.f32.mrf.mxu0
    %v522 = vadd.f32 0.0, %v521
    %v523 = vpop.f32.mrf.mxu0
    %v524 = vadd.f32 0.0, %v523
    %525 = vmatmul.bf16.gmra.mxu0 %v308
    %v526 = vpop.f32.mrf.mxu0
    %v527 = vadd.f32 0.0, %v526
    %v528 = vpop.f32.mrf.mxu0
    %v529 = vadd.f32 0.0, %v528
    %530 = vmatmul.bf16.gmra.mxu0 %v309
    %v531 = vpop.f32.mrf.mxu0
    %v532 = vadd.f32 0.0, %v531
    %v533 = vpop.f32.mrf.mxu0
    %v534 = vadd.f32 0.0, %v533
    %535 = vmatmul.bf16.gmra.mxu0 %v310
    %v536 = vpop.f32.mrf.mxu0
    %v537 = vadd.f32 0.0, %v536
    %v538 = vpop.f32.mrf.mxu0
    %v539 = vadd.f32 0.0, %v538
    %540 = vmatmul.bf16.gmra.mxu0 %v311
    %v541 = vpop.f32.mrf.mxu0
    %v542 = vadd.f32 0.0, %v541
    %v543 = vpop.f32.mrf.mxu0
    %v544 = vadd.f32 0.0, %v543
    %545 = vdwg.mxu0
    %546 = vmatpush.bf16.msra.mxu0 %v423
    %547 = vmatpush.bf16.msra.mxu0 %v420
    %548 = vmatpush.bf16.msra.mxu0 %v417
    %549 = vmatpush.bf16.msra.mxu0 %v414
    %550 = vmatpush.bf16.msra.mxu0 %v411
    %551 = vmatpush.bf16.msra.mxu0 %v408
    %552 = vmatpush.bf16.msra.mxu0 %v405
    %553 = vmatpush.bf16.msra.mxu0 %v402
    %554 = vmatmul.bf16.gmra.mxu0 %v304
    %v555 = vpop.f32.mrf.mxu0
    %v556 = vadd.f32 0.0, %v555
    %v557 = vpop.f32.mrf.mxu0
    %v558 = vadd.f32 0.0, %v557
    %559 = vmatmul.bf16.gmra.mxu0 %v305
    %v560 = vpop.f32.mrf.mxu0
    %v561 = vadd.f32 0.0, %v560
    %v562 = vpop.f32.mrf.mxu0
    %v563 = vadd.f32 0.0, %v562
    %564 = vmatmul.bf16.gmra.mxu0 %v306
    %v565 = vpop.f32.mrf.mxu0
    %v566 = vadd.f32 0.0, %v565
    %v567 = vpop.f32.mrf.mxu0
    %v568 = vadd.f32 0.0, %v567
    %569 = vmatmul.bf16.gmra.mxu0 %v307
    %v570 = vpop.f32.mrf.mxu0
    %v571 = vadd.f32 0.0, %v570
    %v572 = vpop.f32.mrf.mxu0
    %v573 = vadd.f32 0.0, %v572
    %574 = vmatmul.bf16.gmra.mxu0 %v308
    %v575 = vpop.f32.mrf.mxu0
    %v576 = vadd.f32 0.0, %v575
    %v577 = vpop.f32.mrf.mxu0
    %v578 = vadd.f32 0.0, %v577
    %579 = vmatmul.bf16.gmra.mxu0 %v309
    %v580 = vpop.f32.mrf.mxu0
    %v581 = vadd.f32 0.0, %v580
    %v582 = vpop.f32.mrf.mxu0
    %v583 = vadd.f32 0.0, %v582
    %584 = vmatmul.bf16.gmra.mxu0 %v310
    %v585 = vpop.f32.mrf.mxu0
    %v586 = vadd.f32 0.0, %v585
    %v587 = vpop.f32.mrf.mxu0
    %v588 = vadd.f32 0.0, %v587
    %589 = vmatmul.bf16.gmra.mxu0 %v311
    %v590 = vpop.f32.mrf.mxu0
    %v591 = vadd.f32 0.0, %v590
    %v592 = vpop.f32.mrf.mxu0
    %v593 = vadd.f32 0.0, %v592
    %594 = vdwg.mxu0
    %v595 = vpack.c.bf16 %v460, %v458
    %v596 = vpack.c.bf16 %v509, %v507
    %v597 = vpack.c.bf16 %v558, %v556
    %v598 = vpack.c.bf16 %v465, %v463
    %v599 = vpack.c.bf16 %v514, %v512
    %v600 = vpack.c.bf16 %v563, %v561
    %v601 = vpack.c.bf16 %v470, %v468
    %v602 = vpack.c.bf16 %v519, %v517
    %v603 = vpack.c.bf16 %v568, %v566
    %v604 = vpack.c.bf16 %v475, %v473
    %v605 = vpack.c.bf16 %v524, %v522
    %v606 = vpack.c.bf16 %v573, %v571
    %v607 = vpack.c.bf16 %v480, %v478
    %v608 = vpack.c.bf16 %v529, %v527
    %v609 = vpack.c.bf16 %v578, %v576
    %v610 = vpack.c.bf16 %v485, %v483
    %v611 = vpack.c.bf16 %v534, %v532
    %v612 = vpack.c.bf16 %v583, %v581
    %v613 = vpack.c.bf16 %v490, %v488
    %v614 = vpack.c.bf16 %v539, %v537
    %v615 = vpack.c.bf16 %v588, %v586
    %v616 = vpack.c.bf16 %v495, %v493
    %v617 = vpack.c.bf16 %v544, %v542
    %v618 = vpack.c.bf16 %v593, %v591
    %v619 = vld [vmem:[#allocation7] sm:$0xff]
    %v620 = vld [vmem:[#allocation7 + $0x8] sm:$0xf]
    %v621 = vld [vmem:[#allocation7 + $0xc] sm:$0xff]
    %v622 = vld [vmem:[#allocation7 + $0x14] sm:$0xf]
    %v623 = vld [vmem:[#allocation7 + $0x18] sm:$0xff]
    %v624 = vld [vmem:[#allocation7 + $0x20] sm:$0xf]
    %v625 = vld [vmem:[#allocation7 + $0x24] sm:$0xff]
    %v626 = vld [vmem:[#allocation7 + $0x2c] sm:$0xf]
    %v627 = vld [vmem:[#allocation7 + $0x30] sm:$0xff]
    %v628 = vld [vmem:[#allocation7 + $0x38] sm:$0xf]
    %v629 = vld [vmem:[#allocation7 + $0x3c] sm:$0xff]
    %v630 = vld [vmem:[#allocation7 + $0x44] sm:$0xf]
    %v631 = vld [vmem:[#allocation7 + $0x48] sm:$0xff]
    %v632 = vld [vmem:[#allocation7 + $0x50] sm:$0xf]
    %v633 = vld [vmem:[#allocation7 + $0x54] sm:$0xff]
    %v634 = vld [vmem:[#allocation7 + $0x5c] sm:$0xf]
    %v635 = vld [vmem:[#allocation7 + $0x60] sm:$0xff]
    %v636 = vld [vmem:[#allocation7 + $0x68] sm:$0xf]
    %v637 = vld [vmem:[#allocation7 + $0x6c] sm:$0xff]
    %v638 = vld [vmem:[#allocation7 + $0x74] sm:$0xf]
    %v639 = vld [vmem:[#allocation7 + $0x78] sm:$0xff]
    %v640 = vld [vmem:[#allocation7 + $0x80] sm:$0xf]
    %v641 = vld [vmem:[#allocation7 + $0x84] sm:$0xff]
    %v642 = vld [vmem:[#allocation7 + $0x8c] sm:$0xf]
    %v643 = vld [vmem:[#allocation7 + $0x90] sm:$0xff]
    %v644 = vld [vmem:[#allocation7 + $0x98] sm:$0xf]
    %v645 = vld [vmem:[#allocation7 + $0x9c] sm:$0xff]
    %v646 = vld [vmem:[#allocation7 + $0xa4] sm:$0xf]
    %v647 = vld [vmem:[#allocation7 + $0xa8] sm:$0xff]
    %v648 = vld [vmem:[#allocation7 + $0xb0] sm:$0xf]
    %v649 = vld [vmem:[#allocation7 + $0xb4] sm:$0xff]
    %v650 = vld [vmem:[#allocation7 + $0xbc] sm:$0xf]
    %v651 = vld [vmem:[#allocation7 + $0xc0] sm:$0xff]
    %v652 = vld [vmem:[#allocation7 + $0xc8] sm:$0xf]
    %v653 = vld [vmem:[#allocation7 + $0xcc] sm:$0xff]
    %v654 = vld [vmem:[#allocation7 + $0xd4] sm:$0xf]
    %v655 = vld [vmem:[#allocation7 + $0xd8] sm:$0xff]
    %v656 = vld [vmem:[#allocation7 + $0xe0] sm:$0xf]
    %v657 = vld [vmem:[#allocation7 + $0xe4] sm:$0xff]
    %v658 = vld [vmem:[#allocation7 + $0xec] sm:$0xf]
    %v659 = vld [vmem:[#allocation7 + $0xf0] sm:$0xff]
    %v660 = vld [vmem:[#allocation7 + $0xf8] sm:$0xf]
    %v661 = vld [vmem:[#allocation7 + $0xfc] sm:$0xff]
    %v662 = vld [vmem:[#allocation7 + $0x104] sm:$0xf]
    %v663 = vld [vmem:[#allocation7 + $0x108] sm:$0xff]
    %v664 = vld [vmem:[#allocation7 + $0x110] sm:$0xf]
    %v665 = vld [vmem:[#allocation7 + $0x114] sm:$0xff]
    %v666 = vld [vmem:[#allocation7 + $0x11c] sm:$0xf]
    %v667 = vld [vmem:[#allocation7 + $0x120] sm:$0xff]
    %v668 = vld [vmem:[#allocation7 + $0x128] sm:$0xf]
    %v669 = vld [vmem:[#allocation7 + $0x12c] sm:$0xff]
    %v670 = vld [vmem:[#allocation7 + $0x134] sm:$0xf]
    %v671 = vld [vmem:[#allocation7 + $0x138] sm:$0xff]
    %v672 = vld [vmem:[#allocation7 + $0x140] sm:$0xf]
    %v673 = vld [vmem:[#allocation7 + $0x144] sm:$0xff]
    %v674 = vld [vmem:[#allocation7 + $0x14c] sm:$0xf]
    %v675 = vld [vmem:[#allocation7 + $0x150] sm:$0xff]
    %v676 = vld [vmem:[#allocation7 + $0x158] sm:$0xf]
    %v677 = vld [vmem:[#allocation7 + $0x15c] sm:$0xff]
    %v678 = vld [vmem:[#allocation7 + $0x164] sm:$0xf]
    %v679 = vld [vmem:[#allocation7 + $0x168] sm:$0xff]
    %v680 = vld [vmem:[#allocation7 + $0x170] sm:$0xf]
    %v681 = vld [vmem:[#allocation7 + $0x174] sm:$0xff]
    %v682 = vld [vmem:[#allocation7 + $0x17c] sm:$0xf]
    %v683 = vld [vmem:[#allocation7 + $0x180] sm:$0xff]
    %v684 = vld [vmem:[#allocation7 + $0x188] sm:$0xf]
    %v685 = vld [vmem:[#allocation7 + $0x18c] sm:$0xff]
    %v686 = vld [vmem:[#allocation7 + $0x194] sm:$0xf]
    %v687 = vld [vmem:[#allocation7 + $0x198] sm:$0xff]
    %v688 = vld [vmem:[#allocation7 + $0x1a0] sm:$0xf]
    %v689 = vld [vmem:[#allocation7 + $0x1a4] sm:$0xff]
    %v690 = vld [vmem:[#allocation7 + $0x1ac] sm:$0xf]
    %v691 = vld [vmem:[#allocation7 + $0x1b0] sm:$0xff]
    %v692 = vld [vmem:[#allocation7 + $0x1b8] sm:$0xf]
    %v693 = vld [vmem:[#allocation7 + $0x1bc] sm:$0xff]
    %v694 = vld [vmem:[#allocation7 + $0x1c4] sm:$0xf]
    %v695 = vld [vmem:[#allocation7 + $0x1c8] sm:$0xff]
    %v696 = vld [vmem:[#allocation7 + $0x1d0] sm:$0xf]
    %v697 = vld [vmem:[#allocation7 + $0x1d4] sm:$0xff]
    %v698 = vld [vmem:[#allocation7 + $0x1dc] sm:$0xf]
    %v699 = vld [vmem:[#allocation7 + $0x1e0] sm:$0xff]
    %v700 = vld [vmem:[#allocation7 + $0x1e8] sm:$0xf]
    %v701 = vld [vmem:[#allocation7 + $0x1ec] sm:$0xff]
    %v702 = vld [vmem:[#allocation7 + $0x1f4] sm:$0xf]
    %v703 = vld [vmem:[#allocation7 + $0x1f8] sm:$0xff]
    %v704 = vld [vmem:[#allocation7 + $0x200] sm:$0xf]
    %v705 = vld [vmem:[#allocation7 + $0x204] sm:$0xff]
    %v706 = vld [vmem:[#allocation7 + $0x20c] sm:$0xf]
    %v707 = vld [vmem:[#allocation7 + $0x210] sm:$0xff]
    %v708 = vld [vmem:[#allocation7 + $0x218] sm:$0xf]
    %v709 = vld [vmem:[#allocation7 + $0x21c] sm:$0xff]
    %v710 = vld [vmem:[#allocation7 + $0x224] sm:$0xf]
    %v711 = vld [vmem:[#allocation7 + $0x228] sm:$0xff]
    %v712 = vld [vmem:[#allocation7 + $0x230] sm:$0xf]
    %v713 = vld [vmem:[#allocation7 + $0x234] sm:$0xff]
    %v714 = vld [vmem:[#allocation7 + $0x23c] sm:$0xf]
    %v811 = vunpack.c.l.b16 %v619
    %v812 = vunpack.c.h.b16 %v619
    %v813 = vunpack.c.l.b16 %v620
    %v814 = vunpack.c.l.b16 %v621
    %v815 = vunpack.c.h.b16 %v621
    %v816 = vunpack.c.l.b16 %v622
    %v817 = vunpack.c.l.b16 %v623
    %v818 = vunpack.c.h.b16 %v623
    %v819 = vunpack.c.l.b16 %v624
    %v820 = vunpack.c.l.b16 %v625
    %v821 = vunpack.c.h.b16 %v625
    %v822 = vunpack.c.l.b16 %v626
    %v823 = vunpack.c.l.b16 %v627
    %v824 = vunpack.c.h.b16 %v627
    %v825 = vunpack.c.l.b16 %v628
    %v826 = vunpack.c.l.b16 %v629
    %v827 = vunpack.c.h.b16 %v629
    %v828 = vunpack.c.l.b16 %v630
    %v829 = vunpack.c.l.b16 %v631
    %v830 = vunpack.c.h.b16 %v631
    %v831 = vunpack.c.l.b16 %v632
    %v832 = vunpack.c.l.b16 %v633
    %v833 = vunpack.c.h.b16 %v633
    %v834 = vunpack.c.l.b16 %v634
    %v835 = vunpack.c.l.b16 %v635
    %v836 = vunpack.c.h.b16 %v635
    %v837 = vunpack.c.l.b16 %v636
    %v838 = vunpack.c.l.b16 %v637
    %v839 = vunpack.c.h.b16 %v637
    %v840 = vunpack.c.l.b16 %v638
    %v841 = vunpack.c.l.b16 %v639
    %v842 = vunpack.c.h.b16 %v639
    %v843 = vunpack.c.l.b16 %v640
    %v844 = vunpack.c.l.b16 %v641
    %v845 = vunpack.c.h.b16 %v641
    %v846 = vunpack.c.l.b16 %v642
    %v847 = vunpack.c.l.b16 %v643
    %v848 = vunpack.c.h.b16 %v643
    %v849 = vunpack.c.l.b16 %v644
    %v850 = vunpack.c.l.b16 %v645
    %v851 = vunpack.c.h.b16 %v645
    %v852 = vunpack.c.l.b16 %v646
    %v853 = vunpack.c.l.b16 %v647
    %v854 = vunpack.c.h.b16 %v647
    %v855 = vunpack.c.l.b16 %v648
    %v856 = vunpack.c.l.b16 %v649
    %v857 = vunpack.c.h.b16 %v649
    %v858 = vunpack.c.l.b16 %v650
    %v859 = vunpack.c.l.b16 %v651
    %v860 = vunpack.c.h.b16 %v651
    %v861 = vunpack.c.l.b16 %v652
    %v862 = vunpack.c.l.b16 %v653
    %v863 = vunpack.c.h.b16 %v653
    %v864 = vunpack.c.l.b16 %v654
    %v865 = vunpack.c.l.b16 %v655
    %v866 = vunpack.c.h.b16 %v655
    %v867 = vunpack.c.l.b16 %v656
    %v868 = vunpack.c.l.b16 %v657
    %v869 = vunpack.c.h.b16 %v657
    %v870 = vunpack.c.l.b16 %v658
    %v871 = vunpack.c.l.b16 %v659
    %v872 = vunpack.c.h.b16 %v659
    %v873 = vunpack.c.l.b16 %v660
    %v874 = vunpack.c.l.b16 %v661
    %v875 = vunpack.c.h.b16 %v661
    %v876 = vunpack.c.l.b16 %v662
    %v877 = vunpack.c.l.b16 %v663
    %v878 = vunpack.c.h.b16 %v663
    %v879 = vunpack.c.l.b16 %v664
    %v880 = vunpack.c.l.b16 %v665
    %v881 = vunpack.c.h.b16 %v665
    %v882 = vunpack.c.l.b16 %v666
    %v883 = vunpack.c.l.b16 %v667
    %v884 = vunpack.c.h.b16 %v667
    %v885 = vunpack.c.l.b16 %v668
    %v886 = vunpack.c.l.b16 %v669
    %v887 = vunpack.c.h.b16 %v669
    %v888 = vunpack.c.l.b16 %v670
    %v889 = vunpack.c.l.b16 %v671
    %v890 = vunpack.c.h.b16 %v671
    %v891 = vunpack.c.l.b16 %v672
    %v892 = vunpack.c.l.b16 %v673
    %v893 = vunpack.c.h.b16 %v673
    %v894 = vunpack.c.l.b16 %v674
    %v895 = vunpack.c.l.b16 %v675
    %v896 = vunpack.c.h.b16 %v675
    %v897 = vunpack.c.l.b16 %v676
    %v898 = vunpack.c.l.b16 %v677
    %v899 = vunpack.c.h.b16 %v677
    %v900 = vunpack.c.l.b16 %v678
    %v901 = vunpack.c.l.b16 %v679
    %v902 = vunpack.c.h.b16 %v679
    %v903 = vunpack.c.l.b16 %v680
    %v904 = vunpack.c.l.b16 %v681
    %v905 = vunpack.c.h.b16 %v681
    %v906 = vunpack.c.l.b16 %v682
    %v907 = vunpack.c.l.b16 %v683
    %v908 = vunpack.c.h.b16 %v683
    %v909 = vunpack.c.l.b16 %v684
    %v910 = vunpack.c.l.b16 %v685
    %v911 = vunpack.c.h.b16 %v685
    %v912 = vunpack.c.l.b16 %v686
    %v913 = vunpack.c.l.b16 %v687
    %v914 = vunpack.c.h.b16 %v687
    %v915 = vunpack.c.l.b16 %v688
    %v916 = vunpack.c.l.b16 %v689
    %v917 = vunpack.c.h.b16 %v689
    %v918 = vunpack.c.l.b16 %v690
    %v919 = vunpack.c.l.b16 %v691
    %v920 = vunpack.c.h.b16 %v691
    %v921 = vunpack.c.l.b16 %v692
    %v922 = vunpack.c.l.b16 %v693
    %v923 = vunpack.c.h.b16 %v693
    %v924 = vunpack.c.l.b16 %v694
    %v925 = vunpack.c.l.b16 %v695
    %v926 = vunpack.c.h.b16 %v695
    %v927 = vunpack.c.l.b16 %v696
    %v928 = vunpack.c.l.b16 %v697
    %v929 = vunpack.c.h.b16 %v697
    %v930 = vunpack.c.l.b16 %v698
    %v931 = vunpack.c.l.b16 %v699
    %v932 = vunpack.c.h.b16 %v699
    %v933 = vunpack.c.l.b16 %v700
    %v934 = vunpack.c.l.b16 %v701
    %v935 = vunpack.c.h.b16 %v701
    %v936 = vunpack.c.l.b16 %v702
    %v937 = vunpack.c.l.b16 %v703
    %v938 = vunpack.c.h.b16 %v703
    %v939 = vunpack.c.l.b16 %v704
    %v940 = vunpack.c.l.b16 %v705
    %v941 = vunpack.c.h.b16 %v705
    %v942 = vunpack.c.l.b16 %v706
    %v943 = vunpack.c.l.b16 %v707
    %v944 = vunpack.c.h.b16 %v707
    %v945 = vunpack.c.l.b16 %v708
    %v946 = vunpack.c.l.b16 %v709
    %v947 = vunpack.c.h.b16 %v709
    %v948 = vunpack.c.l.b16 %v710
    %v949 = vunpack.c.l.b16 %v711
    %v950 = vunpack.c.h.b16 %v711
    %v951 = vunpack.c.l.b16 %v712
    %v952 = vunpack.c.l.b16 %v713
    %v953 = vunpack.c.h.b16 %v713
    %v954 = vunpack.c.l.b16 %v714
    %v955 = vpack.c.b16 %v814, %v811
    %v956 = vpack.c.b16 %v815, %v812
    %v957 = vpack.c.b16 %v816, %v813
    %v958 = vpack.c.b16 %v820, %v817
    %v959 = vpack.c.b16 %v821, %v818
    %v960 = vpack.c.b16 %v822, %v819
    %v961 = vpack.c.b16 %v826, %v823
    %v962 = vpack.c.b16 %v827, %v824
    %v963 = vpack.c.b16 %v828, %v825
    %v964 = vpack.c.b16 %v832, %v829
    %v965 = vpack.c.b16 %v833, %v830
    %v966 = vpack.c.b16 %v834, %v831
    %v967 = vpack.c.b16 %v838, %v835
    %v968 = vpack.c.b16 %v839, %v836
    %v969 = vpack.c.b16 %v840, %v837
    %v970 = vpack.c.b16 %v844, %v841
    %v971 = vpack.c.b16 %v845, %v842
    %v972 = vpack.c.b16 %v846, %v843
    %v973 = vpack.c.b16 %v850, %v847
    %v974 = vpack.c.b16 %v851, %v848
    %v975 = vpack.c.b16 %v852, %v849
    %v976 = vpack.c.b16 %v856, %v853
    %v977 = vpack.c.b16 %v857, %v854
    %v978 = vpack.c.b16 %v858, %v855
    %v979 = vpack.c.b16 %v862, %v859
    %v980 = vpack.c.b16 %v863, %v860
    %v981 = vpack.c.b16 %v864, %v861
    %v982 = vpack.c.b16 %v868, %v865
    %v983 = vpack.c.b16 %v869, %v866
    %v984 = vpack.c.b16 %v870, %v867
    %v985 = vpack.c.b16 %v874, %v871
    %v986 = vpack.c.b16 %v875, %v872
    %v987 = vpack.c.b16 %v876, %v873
    %v988 = vpack.c.b16 %v880, %v877
    %v989 = vpack.c.b16 %v881, %v878
    %v990 = vpack.c.b16 %v882, %v879
    %v991 = vpack.c.b16 %v886, %v883
    %v992 = vpack.c.b16 %v887, %v884
    %v993 = vpack.c.b16 %v888, %v885
    %v994 = vpack.c.b16 %v892, %v889
    %v995 = vpack.c.b16 %v893, %v890
    %v996 = vpack.c.b16 %v894, %v891
    %v997 = vpack.c.b16 %v898, %v895
    %v998 = vpack.c.b16 %v899, %v896
    %v999 = vpack.c.b16 %v900, %v897
    %v1000 = vpack.c.b16 %v904, %v901
    %v1001 = vpack.c.b16 %v905, %v902
    %v1002 = vpack.c.b16 %v906, %v903
    %v1003 = vpack.c.b16 %v910, %v907
    %v1004 = vpack.c.b16 %v911, %v908
    %v1005 = vpack.c.b16 %v912, %v909
    %v1006 = vpack.c.b16 %v916, %v913
    %v1007 = vpack.c.b16 %v917, %v914
    %v1008 = vpack.c.b16 %v918, %v915
    %v1009 = vpack.c.b16 %v922, %v919
    %v1010 = vpack.c.b16 %v923, %v920
    %v1011 = vpack.c.b16 %v924, %v921
    %v1012 = vpack.c.b16 %v928, %v925
    %v1013 = vpack.c.b16 %v929, %v926
    %v1014 = vpack.c.b16 %v930, %v927
    %v1015 = vpack.c.b16 %v934, %v931
    %v1016 = vpack.c.b16 %v935, %v932
    %v1017 = vpack.c.b16 %v936, %v933
    %v1018 = vpack.c.b16 %v940, %v937
    %v1019 = vpack.c.b16 %v941, %v938
    %v1020 = vpack.c.b16 %v942, %v939
    %v1021 = vpack.c.b16 %v946, %v943
    %v1022 = vpack.c.b16 %v947, %v944
    %v1023 = vpack.c.b16 %v948, %v945
    %v1024 = vpack.c.b16 %v952, %v949
    %v1025 = vpack.c.b16 %v953, %v950
    %v1026 = vpack.c.b16 %v954, %v951
    %1099 = vmatpush.bf16.msra.mxu0 %v976
    %1100 = vmatpush.bf16.msra.mxu0 %v973
    %1101 = vmatpush.bf16.msra.mxu0 %v970
    %1102 = vmatpush.bf16.msra.mxu0 %v967
    %1103 = vmatpush.bf16.msra.mxu0 %v964
    %1104 = vmatpush.bf16.msra.mxu0 %v961
    %1105 = vmatpush.bf16.msra.mxu0 %v958
    %1106 = vmatpush.bf16.msra.mxu0 %v955
    %1107 = vmatmul.bf16.gmra.mxu0 %v595
    %v1108 = vpop.f32.mrf.mxu0
    %v1109 = vadd.f32 0.0, %v1108
    %v1110 = vpop.f32.mrf.mxu0
    %v1111 = vadd.f32 0.0, %v1110
    %1112 = vmatmul.bf16.gmra.mxu0 %v598
    %v1113 = vpop.f32.mrf.mxu0
    %v1114 = vadd.f32 0.0, %v1113
    %v1115 = vpop.f32.mrf.mxu0
    %v1116 = vadd.f32 0.0, %v1115
    %1117 = vmatmul.bf16.gmra.mxu0 %v601
    %v1118 = vpop.f32.mrf.mxu0
    %v1119 = vadd.f32 0.0, %v1118
    %v1120 = vpop.f32.mrf.mxu0
    %v1121 = vadd.f32 0.0, %v1120
    %1122 = vmatmul.bf16.gmra.mxu0 %v604
    %v1123 = vpop.f32.mrf.mxu0
    %v1124 = vadd.f32 0.0, %v1123
    %v1125 = vpop.f32.mrf.mxu0
    %v1126 = vadd.f32 0.0, %v1125
    %1127 = vmatmul.bf16.gmra.mxu0 %v607
    %v1128 = vpop.f32.mrf.mxu0
    %v1129 = vadd.f32 0.0, %v1128
    %v1130 = vpop.f32.mrf.mxu0
    %v1131 = vadd.f32 0.0, %v1130
    %1132 = vmatmul.bf16.gmra.mxu0 %v610
    %v1133 = vpop.f32.mrf.mxu0
    %v1134 = vadd.f32 0.0, %v1133
    %v1135 = vpop.f32.mrf.mxu0
    %v1136 = vadd.f32 0.0, %v1135
    %1137 = vmatmul.bf16.gmra.mxu0 %v613
    %v1138 = vpop.f32.mrf.mxu0
    %v1139 = vadd.f32 0.0, %v1138
    %v1140 = vpop.f32.mrf.mxu0
    %v1141 = vadd.f32 0.0, %v1140
    %1142 = vmatmul.bf16.gmra.mxu0 %v616
    %v1143 = vpop.f32.mrf.mxu0
    %v1144 = vadd.f32 0.0, %v1143
    %v1145 = vpop.f32.mrf.mxu0
    %v1146 = vadd.f32 0.0, %v1145
    %1147 = vdwg.mxu0
    %1148 = vmatpush.bf16.msra.mxu0 %v1000
    %1149 = vmatpush.bf16.msra.mxu0 %v997
    %1150 = vmatpush.bf16.msra.mxu0 %v994
    %1151 = vmatpush.bf16.msra.mxu0 %v991
    %1152 = vmatpush.bf16.msra.mxu0 %v988
    %1153 = vmatpush.bf16.msra.mxu0 %v985
    %1154 = vmatpush.bf16.msra.mxu0 %v982
    %1155 = vmatpush.bf16.msra.mxu0 %v979
    %1156 = vmatmul.bf16.gmra.mxu0 %v596
    %v1157 = vpop.f32.mrf.mxu0
    %v1158 = vadd.f32 %v1109, %v1157
    %v1159 = vpop.f32.mrf.mxu0
    %v1160 = vadd.f32 %v1111, %v1159
    %1161 = vmatmul.bf16.gmra.mxu0 %v599
    %v1162 = vpop.f32.mrf.mxu0
    %v1163 = vadd.f32 %v1114, %v1162
    %v1164 = vpop.f32.mrf.mxu0
    %v1165 = vadd.f32 %v1116, %v1164
    %1166 = vmatmul.bf16.gmra.mxu0 %v602
    %v1167 = vpop.f32.mrf.mxu0
    %v1168 = vadd.f32 %v1119, %v1167
    %v1169 = vpop.f32.mrf.mxu0
    %v1170 = vadd.f32 %v1121, %v1169
    %1171 = vmatmul.bf16.gmra.mxu0 %v605
    %v1172 = vpop.f32.mrf.mxu0
    %v1173 = vadd.f32 %v1124, %v1172
    %v1174 = vpop.f32.mrf.mxu0
    %v1175 = vadd.f32 %v1126, %v1174
    %1176 = vmatmul.bf16.gmra.mxu0 %v608
    %v1177 = vpop.f32.mrf.mxu0
    %v1178 = vadd.f32 %v1129, %v1177
    %v1179 = vpop.f32.mrf.mxu0
    %v1180 = vadd.f32 %v1131, %v1179
    %1181 = vmatmul.bf16.gmra.mxu0 %v611
    %v1182 = vpop.f32.mrf.mxu0
    %v1183 = vadd.f32 %v1134, %v1182
    %v1184 = vpop.f32.mrf.mxu0
    %v1185 = vadd.f32 %v1136, %v1184
    %1186 = vmatmul.bf16.gmra.mxu0 %v614
    %v1187 = vpop.f32.mrf.mxu0
    %v1188 = vadd.f32 %v1139, %v1187
    %v1189 = vpop.f32.mrf.mxu0
    %v1190 = vadd.f32 %v1141, %v1189
    %1191 = vmatmul.bf16.gmra.mxu0 %v617
    %v1192 = vpop.f32.mrf.mxu0
    %v1193 = vadd.f32 %v1144, %v1192
    %v1194 = vpop.f32.mrf.mxu0
    %v1195 = vadd.f32 %v1146, %v1194
    %1196 = vdwg.mxu0
    %1197 = vmatpush.bf16.msra.mxu0 %v1024
    %1198 = vmatpush.bf16.msra.mxu0 %v1021
    %1199 = vmatpush.bf16.msra.mxu0 %v1018
    %1200 = vmatpush.bf16.msra.mxu0 %v1015
    %1201 = vmatpush.bf16.msra.mxu0 %v1012
    %1202 = vmatpush.bf16.msra.mxu0 %v1009
    %1203 = vmatpush.bf16.msra.mxu0 %v1006
    %1204 = vmatpush.bf16.msra.mxu0 %v1003
    %1205 = vmatmul.bf16.gmra.mxu0 %v597
    %v1206 = vpop.f32.mrf.mxu0
    %v1207 = vadd.f32 %v1158, %v1206
    %v1208 = vpop.f32.mrf.mxu0
    %v1209 = vadd.f32 %v1160, %v1208
    %1210 = vmatmul.bf16.gmra.mxu0 %v600
    %v1211 = vpop.f32.mrf.mxu0
    %v1212 = vadd.f32 %v1163, %v1211
    %v1213 = vpop.f32.mrf.mxu0
    %v1214 = vadd.f32 %v1165, %v1213
    %1215 = vmatmul.bf16.gmra.mxu0 %v603
    %v1216 = vpop.f32.mrf.mxu0
    %v1217 = vadd.f32 %v1168, %v1216
    %v1218 = vpop.f32.mrf.mxu0
    %v1219 = vadd.f32 %v1170, %v1218
    %1220 = vmatmul.bf16.gmra.mxu0 %v606
    %v1221 = vpop.f32.mrf.mxu0
    %v1222 = vadd.f32 %v1173, %v1221
    %v1223 = vpop.f32.mrf.mxu0
    %v1224 = vadd.f32 %v1175, %v1223
    %1225 = vmatmul.bf16.gmra.mxu0 %v609
    %v1226 = vpop.f32.mrf.mxu0
    %v1227 = vadd.f32 %v1178, %v1226
    %v1228 = vpop.f32.mrf.mxu0
    %v1229 = vadd.f32 %v1180, %v1228
    %1230 = vmatmul.bf16.gmra.mxu0 %v612
    %v1231 = vpop.f32.mrf.mxu0
    %v1232 = vadd.f32 %v1183, %v1231
    %v1233 = vpop.f32.mrf.mxu0
    %v1234 = vadd.f32 %v1185, %v1233
    %1235 = vmatmul.bf16.gmra.mxu0 %v615
    %v1236 = vpop.f32.mrf.mxu0
    %v1237 = vadd.f32 %v1188, %v1236
    %v1238 = vpop.f32.mrf.mxu0
    %v1239 = vadd.f32 %v1190, %v1238
    %1240 = vmatmul.bf16.gmra.mxu0 %v618
    %v1241 = vpop.f32.mrf.mxu0
    %v1242 = vadd.f32 %v1193, %v1241
    %v1243 = vpop.f32.mrf.mxu0
    %v1244 = vadd.f32 %v1195, %v1243
    %1245 = vdwg.mxu0
    %1246 = vmatpush.bf16.msra.mxu0 %v977
    %1247 = vmatpush.bf16.msra.mxu0 %v974
    %1248 = vmatpush.bf16.msra.mxu0 %v971
    %1249 = vmatpush.bf16.msra.mxu0 %v968
    %1250 = vmatpush.bf16.msra.mxu0 %v965
    %1251 = vmatpush.bf16.msra.mxu0 %v962
    %1252 = vmatpush.bf16.msra.mxu0 %v959
    %1253 = vmatpush.bf16.msra.mxu0 %v956
    %1254 = vmatmul.bf16.gmra.mxu0 %v595
    %v1255 = vpop.f32.mrf.mxu0
    %v1256 = vadd.f32 0.0, %v1255
    %v1257 = vpop.f32.mrf.mxu0
    %v1258 = vadd.f32 0.0, %v1257
    %1259 = vmatmul.bf16.gmra.mxu0 %v598
    %v1260 = vpop.f32.mrf.mxu0
    %v1261 = vadd.f32 0.0, %v1260
    %v1262 = vpop.f32.mrf.mxu0
    %v1263 = vadd.f32 0.0, %v1262
    %1264 = vmatmul.bf16.gmra.mxu0 %v601
    %v1265 = vpop.f32.mrf.mxu0
    %v1266 = vadd.f32 0.0, %v1265
    %v1267 = vpop.f32.mrf.mxu0
    %v1268 = vadd.f32 0.0, %v1267
    %1269 = vmatmul.bf16.gmra.mxu0 %v604
    %v1270 = vpop.f32.mrf.mxu0
    %v1271 = vadd.f32 0.0, %v1270
    %v1272 = vpop.f32.mrf.mxu0
    %v1273 = vadd.f32 0.0, %v1272
    %1274 = vmatmul.bf16.gmra.mxu0 %v607
    %v1275 = vpop.f32.mrf.mxu0
    %v1276 = vadd.f32 0.0, %v1275
    %v1277 = vpop.f32.mrf.mxu0
    %v1278 = vadd.f32 0.0, %v1277
    %1279 = vmatmul.bf16.gmra.mxu0 %v610
    %v1280 = vpop.f32.mrf.mxu0
    %v1281 = vadd.f32 0.0, %v1280
    %v1282 = vpop.f32.mrf.mxu0
    %v1283 = vadd.f32 0.0, %v1282
    %1284 = vmatmul.bf16.gmra.mxu0 %v613
    %v1285 = vpop.f32.mrf.mxu0
    %v1286 = vadd.f32 0.0, %v1285
    %v1287 = vpop.f32.mrf.mxu0
    %v1288 = vadd.f32 0.0, %v1287
    %1289 = vmatmul.bf16.gmra.mxu0 %v616
    %v1290 = vpop.f32.mrf.mxu0
    %v1291 = vadd.f32 0.0, %v1290
    %v1292 = vpop.f32.mrf.mxu0
    %v1293 = vadd.f32 0.0, %v1292
    %1294 = vdwg.mxu0
    %1295 = vmatpush.bf16.msra.mxu0 %v1001
    %1296 = vmatpush.bf16.msra.mxu0 %v998
    %1297 = vmatpush.bf16.msra.mxu0 %v995
    %1298 = vmatpush.bf16.msra.mxu0 %v992
    %1299 = vmatpush.bf16.msra.mxu0 %v989
    %1300 = vmatpush.bf16.msra.mxu0 %v986
    %1301 = vmatpush.bf16.msra.mxu0 %v983
    %1302 = vmatpush.bf16.msra.mxu0 %v980
    %1303 = vmatmul.bf16.gmra.mxu0 %v596
    %v1304 = vpop.f32.mrf.mxu0
    %v1305 = vadd.f32 %v1256, %v1304
    %v1306 = vpop.f32.mrf.mxu0
    %v1307 = vadd.f32 %v1258, %v1306
    %1308 = vmatmul.bf16.gmra.mxu0 %v599
    %v1309 = vpop.f32.mrf.mxu0
    %v1310 = vadd.f32 %v1261, %v1309
    %v1311 = vpop.f32.mrf.mxu0
    %v1312 = vadd.f32 %v1263, %v1311
    %1313 = vmatmul.bf16.gmra.mxu0 %v602
    %v1314 = vpop.f32.mrf.mxu0
    %v1315 = vadd.f32 %v1266, %v1314
    %v1316 = vpop.f32.mrf.mxu0
    %v1317 = vadd.f32 %v1268, %v1316
    %1318 = vmatmul.bf16.gmra.mxu0 %v605
    %v1319 = vpop.f32.mrf.mxu0
    %v1320 = vadd.f32 %v1271, %v1319
    %v1321 = vpop.f32.mrf.mxu0
    %v1322 = vadd.f32 %v1273, %v1321
    %1323 = vmatmul.bf16.gmra.mxu0 %v608
    %v1324 = vpop.f32.mrf.mxu0
    %v1325 = vadd.f32 %v1276, %v1324
    %v1326 = vpop.f32.mrf.mxu0
    %v1327 = vadd.f32 %v1278, %v1326
    %1328 = vmatmul.bf16.gmra.mxu0 %v611
    %v1329 = vpop.f32.mrf.mxu0
    %v1330 = vadd.f32 %v1281, %v1329
    %v1331 = vpop.f32.mrf.mxu0
    %v1332 = vadd.f32 %v1283, %v1331
    %1333 = vmatmul.bf16.gmra.mxu0 %v614
    %v1334 = vpop.f32.mrf.mxu0
    %v1335 = vadd.f32 %v1286, %v1334
    %v1336 = vpop.f32.mrf.mxu0
    %v1337 = vadd.f32 %v1288, %v1336
    %1338 = vmatmul.bf16.gmra.mxu0 %v617
    %v1339 = vpop.f32.mrf.mxu0
    %v1340 = vadd.f32 %v1291, %v1339
    %v1341 = vpop.f32.mrf.mxu0
    %v1342 = vadd.f32 %v1293, %v1341
    %1343 = vdwg.mxu0
    %1344 = vmatpush.bf16.msra.mxu0 %v1025
    %1345 = vmatpush.bf16.msra.mxu0 %v1022
    %1346 = vmatpush.bf16.msra.mxu0 %v1019
    %1347 = vmatpush.bf16.msra.mxu0 %v1016
    %1348 = vmatpush.bf16.msra.mxu0 %v1013
    %1349 = vmatpush.bf16.msra.mxu0 %v1010
    %1350 = vmatpush.bf16.msra.mxu0 %v1007
    %1351 = vmatpush.bf16.msra.mxu0 %v1004
    %1352 = vmatmul.bf16.gmra.mxu0 %v597
    %v1353 = vpop.f32.mrf.mxu0
    %v1354 = vadd.f32 %v1305, %v1353
    %v1355 = vpop.f32.mrf.mxu0
    %v1356 = vadd.f32 %v1307, %v1355
    %1357 = vmatmul.bf16.gmra.mxu0 %v600
    %v1358 = vpop.f32.mrf.mxu0
    %v1359 = vadd.f32 %v1310, %v1358
    %v1360 = vpop.f32.mrf.mxu0
    %v1361 = vadd.f32 %v1312, %v1360
    %1362 = vmatmul.bf16.gmra.mxu0 %v603
    %v1363 = vpop.f32.mrf.mxu0
    %v1364 = vadd.f32 %v1315, %v1363
    %v1365 = vpop.f32.mrf.mxu0
    %v1366 = vadd.f32 %v1317, %v1365
    %1367 = vmatmul.bf16.gmra.mxu0 %v606
    %v1368 = vpop.f32.mrf.mxu0
    %v1369 = vadd.f32 %v1320, %v1368
    %v1370 = vpop.f32.mrf.mxu0
    %v1371 = vadd.f32 %v1322, %v1370
    %1372 = vmatmul.bf16.gmra.mxu0 %v609
    %v1373 = vpop.f32.mrf.mxu0
    %v1374 = vadd.f32 %v1325, %v1373
    %v1375 = vpop.f32.mrf.mxu0
    %v1376 = vadd.f32 %v1327, %v1375
    %1377 = vmatmul.bf16.gmra.mxu0 %v612
    %v1378 = vpop.f32.mrf.mxu0
    %v1379 = vadd.f32 %v1330, %v1378
    %v1380 = vpop.f32.mrf.mxu0
    %v1381 = vadd.f32 %v1332, %v1380
    %1382 = vmatmul.bf16.gmra.mxu0 %v615
    %v1383 = vpop.f32.mrf.mxu0
    %v1384 = vadd.f32 %v1335, %v1383
    %v1385 = vpop.f32.mrf.mxu0
    %v1386 = vadd.f32 %v1337, %v1385
    %1387 = vmatmul.bf16.gmra.mxu0 %v618
    %v1388 = vpop.f32.mrf.mxu0
    %v1389 = vadd.f32 %v1340, %v1388
    %v1390 = vpop.f32.mrf.mxu0
    %v1391 = vadd.f32 %v1342, %v1390
    %1392 = vdwg.mxu0
    %1393 = vmatpush.bf16.msra.mxu0 %v978
    %1394 = vmatpush.bf16.msra.mxu0 %v975
    %1395 = vmatpush.bf16.msra.mxu0 %v972
    %1396 = vmatpush.bf16.msra.mxu0 %v969
    %1397 = vmatpush.bf16.msra.mxu0 %v966
    %1398 = vmatpush.bf16.msra.mxu0 %v963
    %1399 = vmatpush.bf16.msra.mxu0 %v960
    %1400 = vmatpush.bf16.msra.mxu0 %v957
    %1401 = vmatmul.bf16.gmra.mxu0 %v595
    %v1402 = vpop.f32.mrf.mxu0
    %v1403 = vadd.f32 0.0, %v1402
    %v1404 = vpop.f32.mrf.mxu0
    %v1405 = vadd.f32 0.0, %v1404
    %1406 = vmatmul.bf16.gmra.mxu0 %v598
    %v1407 = vpop.f32.mrf.mxu0
    %v1408 = vadd.f32 0.0, %v1407
    %v1409 = vpop.f32.mrf.mxu0
    %v1410 = vadd.f32 0.0, %v1409
    %1411 = vmatmul.bf16.gmra.mxu0 %v601
    %v1412 = vpop.f32.mrf.mxu0
    %v1413 = vadd.f32 0.0, %v1412
    %v1414 = vpop.f32.mrf.mxu0
    %v1415 = vadd.f32 0.0, %v1414
    %1416 = vmatmul.bf16.gmra.mxu0 %v604
    %v1417 = vpop.f32.mrf.mxu0
    %v1418 = vadd.f32 0.0, %v1417
    %v1419 = vpop.f32.mrf.mxu0
    %v1420 = vadd.f32 0.0, %v1419
    %1421 = vmatmul.bf16.gmra.mxu0 %v607
    %v1422 = vpop.f32.mrf.mxu0
    %v1423 = vadd.f32 0.0, %v1422
    %v1424 = vpop.f32.mrf.mxu0
    %v1425 = vadd.f32 0.0, %v1424
    %1426 = vmatmul.bf16.gmra.mxu0 %v610
    %v1427 = vpop.f32.mrf.mxu0
    %v1428 = vadd.f32 0.0, %v1427
    %v1429 = vpop.f32.mrf.mxu0
    %v1430 = vadd.f32 0.0, %v1429
    %1431 = vmatmul.bf16.gmra.mxu0 %v613
    %v1432 = vpop.f32.mrf.mxu0
    %v1433 = vadd.f32 0.0, %v1432
    %v1434 = vpop.f32.mrf.mxu0
    %v1435 = vadd.f32 0.0, %v1434
    %1436 = vmatmul.bf16.gmra.mxu0 %v616
    %v1437 = vpop.f32.mrf.mxu0
    %v1438 = vadd.f32 0.0, %v1437
    %v1439 = vpop.f32.mrf.mxu0
    %v1440 = vadd.f32 0.0, %v1439
    %1441 = vdwg.mxu0
    %1442 = vmatpush.bf16.msra.mxu0 %v1002
    %1443 = vmatpush.bf16.msra.mxu0 %v999
    %1444 = vmatpush.bf16.msra.mxu0 %v996
    %1445 = vmatpush.bf16.msra.mxu0 %v993
    %1446 = vmatpush.bf16.msra.mxu0 %v990
    %1447 = vmatpush.bf16.msra.mxu0 %v987
    %1448 = vmatpush.bf16.msra.mxu0 %v984
    %1449 = vmatpush.bf16.msra.mxu0 %v981
    %1450 = vmatmul.bf16.gmra.mxu0 %v596
    %v1451 = vpop.f32.mrf.mxu0
    %v1452 = vadd.f32 %v1403, %v1451
    %v1453 = vpop.f32.mrf.mxu0
    %v1454 = vadd.f32 %v1405, %v1453
    %1455 = vmatmul.bf16.gmra.mxu0 %v599
    %v1456 = vpop.f32.mrf.mxu0
    %v1457 = vadd.f32 %v1408, %v1456
    %v1458 = vpop.f32.mrf.mxu0
    %v1459 = vadd.f32 %v1410, %v1458
    %1460 = vmatmul.bf16.gmra.mxu0 %v602
    %v1461 = vpop.f32.mrf.mxu0
    %v1462 = vadd.f32 %v1413, %v1461
    %v1463 = vpop.f32.mrf.mxu0
    %v1464 = vadd.f32 %v1415, %v1463
    %1465 = vmatmul.bf16.gmra.mxu0 %v605
    %v1466 = vpop.f32.mrf.mxu0
    %v1467 = vadd.f32 %v1418, %v1466
    %v1468 = vpop.f32.mrf.mxu0
    %v1469 = vadd.f32 %v1420, %v1468
    %1470 = vmatmul.bf16.gmra.mxu0 %v608
    %v1471 = vpop.f32.mrf.mxu0
    %v1472 = vadd.f32 %v1423, %v1471
    %v1473 = vpop.f32.mrf.mxu0
    %v1474 = vadd.f32 %v1425, %v1473
    %1475 = vmatmul.bf16.gmra.mxu0 %v611
    %v1476 = vpop.f32.mrf.mxu0
    %v1477 = vadd.f32 %v1428, %v1476
    %v1478 = vpop.f32.mrf.mxu0
    %v1479 = vadd.f32 %v1430, %v1478
    %1480 = vmatmul.bf16.gmra.mxu0 %v614
    %v1481 = vpop.f32.mrf.mxu0
    %v1482 = vadd.f32 %v1433, %v1481
    %v1483 = vpop.f32.mrf.mxu0
    %v1484 = vadd.f32 %v1435, %v1483
    %1485 = vmatmul.bf16.gmra.mxu0 %v617
    %v1486 = vpop.f32.mrf.mxu0
    %v1487 = vadd.f32 %v1438, %v1486
    %v1488 = vpop.f32.mrf.mxu0
    %v1489 = vadd.f32 %v1440, %v1488
    %1490 = vdwg.mxu0
    %1491 = vmatpush.bf16.msra.mxu0 %v1026
    %1492 = vmatpush.bf16.msra.mxu0 %v1023
    %1493 = vmatpush.bf16.msra.mxu0 %v1020
    %1494 = vmatpush.bf16.msra.mxu0 %v1017
    %1495 = vmatpush.bf16.msra.mxu0 %v1014
    %1496 = vmatpush.bf16.msra.mxu0 %v1011
    %1497 = vmatpush.bf16.msra.mxu0 %v1008
    %1498 = vmatpush.bf16.msra.mxu0 %v1005
    %1499 = vmatmul.bf16.gmra.mxu0 %v597
    %v1500 = vpop.f32.mrf.mxu0
    %v1501 = vadd.f32 %v1452, %v1500
    %v1502 = vpop.f32.mrf.mxu0
    %v1503 = vadd.f32 %v1454, %v1502
    %1504 = vmatmul.bf16.gmra.mxu0 %v600
    %v1505 = vpop.f32.mrf.mxu0
    %v1506 = vadd.f32 %v1457, %v1505
    %v1507 = vpop.f32.mrf.mxu0
    %v1508 = vadd.f32 %v1459, %v1507
    %1509 = vmatmul.bf16.gmra.mxu0 %v603
    %v1510 = vpop.f32.mrf.mxu0
    %v1511 = vadd.f32 %v1462, %v1510
    %v1512 = vpop.f32.mrf.mxu0
    %v1513 = vadd.f32 %v1464, %v1512
    %1514 = vmatmul.bf16.gmra.mxu0 %v606
    %v1515 = vpop.f32.mrf.mxu0
    %v1516 = vadd.f32 %v1467, %v1515
    %v1517 = vpop.f32.mrf.mxu0
    %v1518 = vadd.f32 %v1469, %v1517
    %1519 = vmatmul.bf16.gmra.mxu0 %v609
    %v1520 = vpop.f32.mrf.mxu0
    %v1521 = vadd.f32 %v1472, %v1520
    %v1522 = vpop.f32.mrf.mxu0
    %v1523 = vadd.f32 %v1474, %v1522
    %1524 = vmatmul.bf16.gmra.mxu0 %v612
    %v1525 = vpop.f32.mrf.mxu0
    %v1526 = vadd.f32 %v1477, %v1525
    %v1527 = vpop.f32.mrf.mxu0
    %v1528 = vadd.f32 %v1479, %v1527
    %1529 = vmatmul.bf16.gmra.mxu0 %v615
    %v1530 = vpop.f32.mrf.mxu0
    %v1531 = vadd.f32 %v1482, %v1530
    %v1532 = vpop.f32.mrf.mxu0
    %v1533 = vadd.f32 %v1484, %v1532
    %1534 = vmatmul.bf16.gmra.mxu0 %v618
    %v1535 = vpop.f32.mrf.mxu0
    %v1536 = vadd.f32 %v1487, %v1535
    %v1537 = vpop.f32.mrf.mxu0
    %v1538 = vadd.f32 %v1489, %v1537
    %1539 = vdwg.mxu0
    %v1540 = vrot.slane %v1354, 1
    %v1541 = vrot.slane %v1356, 1
    %v1542 = vrot.slane %v1359, 1
    %v1543 = vrot.slane %v1361, 1
    %v1544 = vrot.slane %v1364, 1
    %v1545 = vrot.slane %v1366, 1
    %v1546 = vrot.slane %v1369, 1
    %v1547 = vrot.slane %v1371, 1
    %v1548 = vrot.slane %v1374, 1
    %v1549 = vrot.slane %v1376, 1
    %v1550 = vrot.slane %v1379, 1
    %v1551 = vrot.slane %v1381, 1
    %v1552 = vrot.slane %v1384, 1
    %v1553 = vrot.slane %v1386, 1
    %v1554 = vrot.slane %v1389, 1
    %v1555 = vrot.slane %v1391, 1
    %v1556 = vlaneseq
    %v1557 = vshrl.u32 %v1556, 7
    %vm1558 = vcmp.lt.s32.totalorder %v1557, 7
    %v1559 = vsel %vm1558, %v1554, %v1555
    %v1560 = vsel %vm1558, %v1553, %v1554
    %v1561 = vsel %vm1558, %v1552, %v1553
    %v1562 = vsel %vm1558, %v1551, %v1552
    %v1563 = vsel %vm1558, %v1550, %v1551
    %v1564 = vsel %vm1558, %v1549, %v1550
    %v1565 = vsel %vm1558, %v1548, %v1549
    %v1566 = vsel %vm1558, %v1547, %v1548
    %v1567 = vsel %vm1558, %v1546, %v1547
    %v1568 = vsel %vm1558, %v1545, %v1546
    %v1569 = vsel %vm1558, %v1544, %v1545
    %v1570 = vsel %vm1558, %v1543, %v1544
    %v1571 = vsel %vm1558, %v1542, %v1543
    %v1572 = vsel %vm1558, %v1541, %v1542
    %v1573 = vsel %vm1558, %v1540, %v1541
    %v1574 = vsel %vm1558, %v1555, %v1540
    %v1575 = vadd.f32 %v1207, %v1573
    %v1576 = vadd.f32 %v1209, %v1572
    %v1577 = vadd.f32 %v1212, %v1571
    %v1578 = vadd.f32 %v1214, %v1570
    %v1579 = vadd.f32 %v1217, %v1569
    %v1580 = vadd.f32 %v1219, %v1568
    %v1581 = vadd.f32 %v1222, %v1567
    %v1582 = vadd.f32 %v1224, %v1566
    %v1583 = vadd.f32 %v1227, %v1565
    %v1584 = vadd.f32 %v1229, %v1564
    %v1585 = vadd.f32 %v1232, %v1563
    %v1586 = vadd.f32 %v1234, %v1562
    %v1587 = vadd.f32 %v1237, %v1561
    %v1588 = vadd.f32 %v1239, %v1560
    %v1589 = vadd.f32 %v1242, %v1559
    %v1590 = vadd.f32 %v1244, %v1574
    %v1591 = vrot.slane %v1501, 2
    %v1592 = vrot.slane %v1503, 2
    %v1593 = vrot.slane %v1506, 2
    %v1594 = vrot.slane %v1508, 2
    %v1595 = vrot.slane %v1511, 2
    %v1596 = vrot.slane %v1513, 2
    %v1597 = vrot.slane %v1516, 2
    %v1598 = vrot.slane %v1518, 2
    %v1599 = vrot.slane %v1521, 2
    %v1600 = vrot.slane %v1523, 2
    %v1601 = vrot.slane %v1526, 2
    %v1602 = vrot.slane %v1528, 2
    %v1603 = vrot.slane %v1531, 2
    %v1604 = vrot.slane %v1533, 2
    %v1605 = vrot.slane %v1536, 2
    %v1606 = vrot.slane %v1538, 2
    %vm1607 = vcmp.lt.s32.totalorder %v1557, 6
    %v1608 = vsel %vm1607, %v1605, %v1606
    %v1609 = vsel %vm1607, %v1604, %v1605
    %v1610 = vsel %vm1607, %v1603, %v1604
    %v1611 = vsel %vm1607, %v1602, %v1603
    %v1612 = vsel %vm1607, %v1601, %v1602
    %v1613 = vsel %vm1607, %v1600, %v1601
    %v1614 = vsel %vm1607, %v1599, %v1600
    %v1615 = vsel %vm1607, %v1598, %v1599
    %v1616 = vsel %vm1607, %v1597, %v1598
    %v1617 = vsel %vm1607, %v1596, %v1597
    %v1618 = vsel %vm1607, %v1595, %v1596
    %v1619 = vsel %vm1607, %v1594, %v1595
    %v1620 = vsel %vm1607, %v1593, %v1594
    %v1621 = vsel %vm1607, %v1592, %v1593
    %v1622 = vsel %vm1607, %v1591, %v1592
    %v1623 = vsel %vm1607, %v1606, %v1591
    %v1624 = vadd.f32 %v1575, %v1622
    %v1625 = vadd.f32 %v1576, %v1621
    %v1626 = vadd.f32 %v1577, %v1620
    %v1627 = vadd.f32 %v1578, %v1619
    %v1628 = vadd.f32 %v1579, %v1618
    %v1629 = vadd.f32 %v1580, %v1617
    %v1630 = vadd.f32 %v1581, %v1616
    %v1631 = vadd.f32 %v1582, %v1615
    %v1632 = vadd.f32 %v1583, %v1614
    %v1633 = vadd.f32 %v1584, %v1613
    %v1634 = vadd.f32 %v1585, %v1612
    %v1635 = vadd.f32 %v1586, %v1611
    %v1636 = vadd.f32 %v1587, %v1610
    %v1637 = vadd.f32 %v1588, %v1609
    %v1638 = vadd.f32 %v1589, %v1608
    %v1639 = vadd.f32 %v1590, %v1623
    %v1640 = vld [vmem:[%s3] sm:$0x1]
    %v1642 = vperm.slane %v1640, 0
    %v1644 = vadd.f32 %v1624, %v1642
    %v1645 = vadd.f32 %v1625, %v1642
    %v1646 = vadd.f32 %v1626, %v1642
    %v1647 = vadd.f32 %v1627, %v1642
    %v1648 = vadd.f32 %v1628, %v1642
    %v1649 = vadd.f32 %v1629, %v1642
    %v1650 = vadd.f32 %v1630, %v1642
    %v1651 = vadd.f32 %v1631, %v1642
    %v1652 = vadd.f32 %v1632, %v1642
    %v1653 = vadd.f32 %v1633, %v1642
    %v1654 = vadd.f32 %v1634, %v1642
    %v1655 = vadd.f32 %v1635, %v1642
    %v1656 = vadd.f32 %v1636, %v1642
    %v1657 = vadd.f32 %v1637, %v1642
    %v1658 = vadd.f32 %v1638, %v1642
    %v1659 = vadd.f32 %v1639, %v1642
    %v1660 = vmax.f32 %v1644, 0.0
    %v1661 = vmax.f32 %v1645, 0.0
    %v1662 = vmax.f32 %v1646, 0.0
    %v1663 = vmax.f32 %v1647, 0.0
    %v1664 = vmax.f32 %v1648, 0.0
    %v1665 = vmax.f32 %v1649, 0.0
    %v1666 = vmax.f32 %v1650, 0.0
    %v1667 = vmax.f32 %v1651, 0.0
    %v1668 = vmax.f32 %v1652, 0.0
    %v1669 = vmax.f32 %v1653, 0.0
    %v1670 = vmax.f32 %v1654, 0.0
    %v1671 = vmax.f32 %v1655, 0.0
    %v1672 = vmax.f32 %v1656, 0.0
    %v1673 = vmax.f32 %v1657, 0.0
    %v1674 = vmax.f32 %v1658, 0.0
    %v1675 = vmax.f32 %v1659, 0.0
    %v1676 = vadd.s32 %v1557, 8
    %vm1677 = vcmp.lt.s32.totalorder %v1557, 8
    %vm1678 = vcmp.lt.s32.totalorder %v1676, 8
    %v1679 = vsel %vm1677, %v1660, 0.0
    %v1680 = vsel %vm1678, %v1661, 0.0
    %v1681 = vsel %vm1677, %v1662, 0.0
    %v1682 = vsel %vm1678, %v1663, 0.0
    %v1683 = vsel %vm1677, %v1664, 0.0
    %v1684 = vsel %vm1678, %v1665, 0.0
    %v1685 = vsel %vm1677, %v1666, 0.0
    %v1686 = vsel %vm1678, %v1667, 0.0
    %v1687 = vsel %vm1677, %v1668, 0.0
    %v1688 = vsel %vm1678, %v1669, 0.0
    %v1689 = vsel %vm1677, %v1670, 0.0
    %v1690 = vsel %vm1678, %v1671, 0.0
    %v1691 = vsel %vm1677, %v1672, 0.0
    %v1692 = vsel %vm1678, %v1673, 0.0
    %v1693 = vsel %vm1677, %v1674, 0.0
    %v1694 = vsel %vm1678, %v1675, 0.0
    %v1695 = vmax.f32 %v1679, %v1680
    %v1696 = vrot.slane %v1695, 4
    %v1697 = vmax.f32 %v1695, %v1696
    %v1698 = vrot.slane %v1697, 2
    %v1699 = vmax.f32 %v1697, %v1698
    %v1700 = vrot.slane %v1699, 1
    %v1701 = vmax.f32 %v1699, %v1700
    %v1702 = vmax.f32 %v1681, %v1682
    %v1703 = vrot.slane %v1702, 4
    %v1704 = vmax.f32 %v1702, %v1703
    %v1705 = vrot.slane %v1704, 2
    %v1706 = vmax.f32 %v1704, %v1705
    %v1707 = vrot.slane %v1706, 1
    %v1708 = vmax.f32 %v1706, %v1707
    %v1709 = vmax.f32 %v1683, %v1684
    %v1710 = vrot.slane %v1709, 4
    %v1711 = vmax.f32 %v1709, %v1710
    %v1712 = vrot.slane %v1711, 2
    %v1713 = vmax.f32 %v1711, %v1712
    %v1714 = vrot.slane %v1713, 1
    %v1715 = vmax.f32 %v1713, %v1714
    %v1716 = vmax.f32 %v1685, %v1686
    %v1717 = vrot.slane %v1716, 4
    %v1718 = vmax.f32 %v1716, %v1717
    %v1719 = vrot.slane %v1718, 2
    %v1720 = vmax.f32 %v1718, %v1719
    %v1721 = vrot.slane %v1720, 1
    %v1722 = vmax.f32 %v1720, %v1721
    %v1723 = vmax.f32 %v1687, %v1688
    %v1724 = vrot.slane %v1723, 4
    %v1725 = vmax.f32 %v1723, %v1724
    %v1726 = vrot.slane %v1725, 2
    %v1727 = vmax.f32 %v1725, %v1726
    %v1728 = vrot.slane %v1727, 1
    %v1729 = vmax.f32 %v1727, %v1728
    %v1730 = vmax.f32 %v1689, %v1690
    %v1731 = vrot.slane %v1730, 4
    %v1732 = vmax.f32 %v1730, %v1731
    %v1733 = vrot.slane %v1732, 2
    %v1734 = vmax.f32 %v1732, %v1733
    %v1735 = vrot.slane %v1734, 1
    %v1736 = vmax.f32 %v1734, %v1735
    %v1737 = vmax.f32 %v1691, %v1692
    %v1738 = vrot.slane %v1737, 4
    %v1739 = vmax.f32 %v1737, %v1738
    %v1740 = vrot.slane %v1739, 2
    %v1741 = vmax.f32 %v1739, %v1740
    %v1742 = vrot.slane %v1741, 1
    %v1743 = vmax.f32 %v1741, %v1742
    %v1744 = vmax.f32 %v1693, %v1694
    %v1745 = vrot.slane %v1744, 4
    %v1746 = vmax.f32 %v1744, %v1745
    %v1747 = vrot.slane %v1746, 2
    %v1748 = vmax.f32 %v1746, %v1747
    %v1749 = vrot.slane %v1748, 1
    %v1750 = vmax.f32 %v1748, %v1749
    %v1751 = vld [vmem:[#allocation8] sm:$0xff]
    %v1752 = vld [vmem:[#allocation8 + $0x8] sm:$0xff]
    %v1753 = vld [vmem:[#allocation8 + $0x10] sm:$0xff]
    %v1754 = vld [vmem:[#allocation8 + $0x18] sm:$0xff]
    %v1755 = vld [vmem:[#allocation8 + $0x20] sm:$0xff]
    %v1756 = vld [vmem:[#allocation8 + $0x28] sm:$0xff]
    %v1757 = vld [vmem:[#allocation8 + $0x30] sm:$0xff]
    %v1758 = vld [vmem:[#allocation8 + $0x38] sm:$0xff]
    %v1759 = vld [vmem:[#allocation8 + $0x40] sm:$0xff]
    %v1760 = vld [vmem:[#allocation8 + $0x48] sm:$0xff]
    %v1761 = vld [vmem:[#allocation8 + $0x50] sm:$0xff]
    %v1762 = vld [vmem:[#allocation8 + $0x58] sm:$0xff]
    %v1763 = vld [vmem:[#allocation8 + $0x60] sm:$0xff]
    %v1764 = vld [vmem:[#allocation8 + $0x68] sm:$0xff]
    %v1765 = vld [vmem:[#allocation8 + $0x70] sm:$0xff]
    %v1766 = vld [vmem:[#allocation8 + $0x78] sm:$0xff]
    %v1767 = vld [vmem:[%s5] sm:$0x1]
    %v1769 = vperm.slane %v1767, 0
    %vm1779 = vcmask 1041409
    %v1780 = vsel %vm1779, %v1708, %v1701
    %vm1781 = vcmask 1042434
    %v1782 = vsel %vm1781, %v1715, %v1780
    %vm1783 = vcmask 1043459
    %v1784 = vsel %vm1783, %v1722, %v1782
    %vm1785 = vcmask 1044484
    %v1786 = vsel %vm1785, %v1729, %v1784
    %vm1787 = vcmask 1045509
    %v1788 = vsel %vm1787, %v1736, %v1786
    %vm1789 = vcmask 1046534
    %v1790 = vsel %vm1789, %v1743, %v1788
    %vm1791 = vcmask 1047559
    %v1792 = vsel %vm1791, %v1750, %v1790
    %1794 = vmatpush.msra.mxu0 %v1766
    %1795 = vmatpush.msra.mxu0 %v1765
    %1796 = vmatpush.msra.mxu0 %v1764
    %1797 = vmatpush.msra.mxu0 %v1763
    %1798 = vmatpush.msra.mxu0 %v1762
    %1799 = vmatpush.msra.mxu0 %v1761
    %1800 = vmatpush.msra.mxu0 %v1760
    %1801 = vmatpush.msra.mxu0 %v1759
    %1802 = vmatpush.msra.mxu0 %v1758
    %1803 = vmatpush.msra.mxu0 %v1757
    %1804 = vmatpush.msra.mxu0 %v1756
    %1805 = vmatpush.msra.mxu0 %v1755
    %1806 = vmatpush.msra.mxu0 %v1754
    %1807 = vmatpush.msra.mxu0 %v1753
    %1808 = vmatpush.msra.mxu0 %v1752
    %1809 = vmatpush.msra.mxu0 %v1751
    %1810 = vmatmul.f32.gmra.mxu0 %v1792
    %v1811 = vpop.f32.mrf.mxu0
    %v1812 = vadd.f32 %v1769, %v1811
    %1813 = vdwg.mxu0
    %vm1814 = vcmp.lt.s32.totalorder %v87, 4
    %v1815 = vsel %vm1814, %v1812, -inf
    %1816 = vmax.xlane.f32.xlu0 %v1815
    %v1817 = vpop.xlane.xlu0 %1816
    %v1818 = vsub.f32 %v1815, %v1817
    %v1819 = vmul.f32 %v1818, 1.442695
    %v1820 = vpow.pop %v1819
    %1821 = vadd.xlane.f32.xlu0 %v1820
    %v1822 = vpop.xlane.xlu0 %1821
    %v1823 = vrcp.pop %v1822
    %v1824 = vmul.f32 %v1820, %v1823
    %1825 = vst [vmem:[#allocation10] sm:$0xff] %v1824
    // Predicated region
    $region42: #{tpu_custom_call.1} parent=1 // pred_check
      _
    $region43: #{tpu_custom_call.1} parent=1 // pred_check_branch
      %1827 = sbr.rel (0) target = $region45
    $region44: #{tpu_custom_call.1} parent=1 // pred_region
      %1829 = vsyncadd [#allocation4], 0
      %s1831 = sshll.u32 [#allocation10], 4
      %s1832 = int_to_ptr.vmem [resolvable:$true] %s1831
      %s1833 = sshll.u32 %s6, 4
      %s1834 = int_to_ptr.hbm [resolvable:$true] %s1833
      %1836 = dma.vmem_to_hbm [thread:$0]  %s1832, 128, %s1834, [#allocation4]
    $region45: #{tpu_custom_call.1} parent=1 // pred_fallthru
      _
    // Predicated region
    $region46: #{tpu_custom_call.1} parent=1 // pred_check
      _
    $region47: #{tpu_custom_call.1} parent=1 // pred_check_branch
      %1838 = sbr.rel (0) target = $region49
    $region48: #{tpu_custom_call.1} parent=1 // pred_region
      %1840 = dma.done [#allocation4], 128
    $region49: #{tpu_custom_call.1} parent=1 // pred_fallthru
      _
    %1841 = vsyncpa [#allocation3], 1
    %1842 = vsyncpa [#allocation6], 1
    %1843 = vsyncpa [#allocation9], 1
    %1844 = vsyncpa [#allocation4], 1

</llo_original>
